<compile_context>
chip_gen: v7x
topology: tpu7x:2x2x1
jax: 0.10.0
libtpu: 0.0.40
codegen_flags: <defaults>
</compile_context>

<pallas_src>
import jax
import jax.numpy as jnp
from jax.experimental import pallas as pl
from jax.experimental.pallas import tpu as pltpu

# ----- small, self-consistent "conf" -----
VOCAB = 100       # conf.vocab_sz
WORD_DIM = 32     # conf.word_dim
FILTERS = 32      # conf.filters_num
KERNEL = 3        # conf.kernel_size
EMB_DIM = 32      # conf.embedding_dim
SEQ = 64          # review-doc length
BATCH = 2


def deepconn_fused_kernel(ids_ref, tables_ref, convw_ref, convb_ref,
                          fcw_ref, fcb_ref, out_ref):
    """Both towers (user, item): gather -> conv -> ReLU -> max-pool -> Linear.

    Whole-array blocks (no grid):
      ids_ref    : (T, B*L, 1) int32   raw flat token ids per tower
      tables_ref : (T, V, D)   f32
      convw_ref  : (T, K, D, F) f32
      convb_ref  : (T, 1, F)   f32
      fcw_ref    : (T, F, E)   f32
      fcb_ref    : (T, 1, E)   f32
      out_ref    : (T, B, E)   f32
    """
    T, BL, _ = ids_ref.shape
    V, D = tables_ref.shape[1], tables_ref.shape[2]
    K = convw_ref.shape[1]
    F = convw_ref.shape[3]
    B = out_ref.shape[1]
    L = BL // B
    L_out = L - K + 1

    vocab_iota = jax.lax.broadcasted_iota(jnp.int32, (BL, V), 1)   # lanes = vocab ids
    # mask over (B, L, F): positions >= L_out within each batch element are
    # garbage windows (roll wraps across batch / array boundaries)
    pos_iota = jax.lax.broadcasted_iota(jnp.int32, (B, L, F), 1)
    valid = pos_iota < L_out

    for t in range(T):                                             # static -> unrolled (user, item)
        # --- embedding gather as ONE one-hot matmul on the MXU ---
        ids = ids_ref[t]                                           # (BL, 1) int32
        one_hot = jnp.where(vocab_iota == ids, 1.0, 0.0).astype(jnp.float32)
        emb = jnp.dot(one_hot, tables_ref[t],
                      preferred_element_type=jnp.float32)          # (BL, D)

        # --- conv = sum of K shifted (BL, D) @ (D, F) matmuls; shifts via XLU roll ---
        acc = jnp.zeros((BL, F), jnp.float32)
        for dk in range(K):                                        # static -> unrolled
            emb_dk = emb if dk == 0 else pltpu.roll(emb, shift=BL - dk, axis=0)
            acc = acc + jnp.dot(emb_dk, convw_ref[t, dk],
                                preferred_element_type=jnp.float32)
        fea = jnp.maximum(acc + convb_ref[t], 0.0)                 # (BL, F)

        # --- masked global max-pool per batch element (no per-b unrolled loop) ---
        fea3 = fea.reshape(B, L, F)                                # 8-aligned sublane split
        pooled = jnp.max(jnp.where(valid, fea3, -jnp.inf), axis=1)  # (B, F)

        # --- batched final Linear ---
        out = jnp.dot(pooled, fcw_ref[t], preferred_element_type=jnp.float32) + fcb_ref[t]
        out_ref[t] = out.astype(out_ref.dtype)                     # dropout == identity (eval)


def deepconn_fused(ids, tables, conv_w, conv_b, fc_w, fc_b, *, batch):
    T = ids.shape[0]
    E = fc_w.shape[2]
    # Grid-less call: every operand is a single whole-array VMEM block
    # (< 100 KB total), both towers handled in one kernel invocation.
    return pl.pallas_call(
        deepconn_fused_kernel,
        out_shape=jax.ShapeDtypeStruct((T, batch, E), jnp.float32),
    )(ids, tables, conv_w, conv_b, fc_w, fc_b)


def encoder_deepconn_forward(params, user_doc, item_doc):
    B, _ = user_doc.shape
    # Only per-call wrapper work: flatten + stack the raw ids (tiny).
    ids = jnp.stack([user_doc.reshape(-1), item_doc.reshape(-1)],
                    axis=0).astype(jnp.int32)[:, :, None]            # (2, B*L, 1)
    out = deepconn_fused(ids, params["tables"], params["conv_w"], params["conv_b"],
                         params["fc_w"], params["fc_b"], batch=B)
    return out[0], out[1]                                            # dropout == identity (eval)


# ----- deterministic parameter init (mirrors module __init__ shapes/schemes) -----
# Per-tower params are stacked along a leading tower axis ONCE here.
def init_params(key):
    ks = jax.random.split(key, 3)
    # xavier_normal embeddings: std = sqrt(2 / (V + D))
    emb_std = (2.0 / (VOCAB + WORD_DIM)) ** 0.5
    tables = emb_std * jax.random.normal(ks[0], (2, VOCAB, WORD_DIM), jnp.float32)
    # xavier_normal conv (torch fan_in = 1*K*D, fan_out = F*K*D)
    conv_std = (2.0 / (1 * KERNEL * WORD_DIM + FILTERS * KERNEL * WORD_DIM)) ** 0.5
    conv_w = conv_std * jax.random.normal(
        ks[1], (2, KERNEL, WORD_DIM, FILTERS), jnp.float32)
    conv_b = jnp.full((2, 1, FILTERS), 0.1, jnp.float32)
    # uniform(-0.1, 0.1) fc weights, bias 0.1
    fc_w = jax.random.uniform(ks[2], (2, FILTERS, EMB_DIM), jnp.float32, -0.1, 0.1)
    fc_b = jnp.full((2, 1, EMB_DIM), 0.1, jnp.float32)
    return dict(tables=tables, conv_w=conv_w, conv_b=conv_b, fc_w=fc_w, fc_b=fc_b)


# ----- plain-JAX reference (mirrors the PyTorch forward) -----
def _ref_tower(table, doc, conv_w, conv_b, fc_w, fc_b):
    emb = table[doc]                                   # (B, L, D)
    B, L, D = emb.shape
    K, _, F = conv_w.shape
    L_out = L - K + 1
    windows = jnp.concatenate([emb[:, dk:dk + L_out, :] for dk in range(K)], axis=2)
    fea = jnp.maximum(windows.reshape(B * L_out, K * D) @ conv_w.reshape(K * D, F)
                      + conv_b, 0.0)
    pooled = fea.reshape(B, L_out, F).max(axis=1)      # (B, F)
    return pooled @ fc_w + fc_b


if __name__ == "__main__":
    key = jax.random.PRNGKey(0)
    k_p, k_u, k_i = jax.random.split(key, 3)
    params = init_params(k_p)

    user_doc = jax.random.randint(k_u, (BATCH, SEQ), 0, VOCAB, dtype=jnp.int32)
    item_doc = jax.random.randint(k_i, (BATCH, SEQ), 0, VOCAB, dtype=jnp.int32)

    fwd = jax.jit(encoder_deepconn_forward)
    u_out, i_out = fwd(params, user_doc, item_doc)
    jax.block_until_ready((u_out, i_out))

    # correctness check against plain-JAX reference
    u_ref = _ref_tower(params["tables"][0], user_doc, params["conv_w"][0],
                       params["conv_b"][0], params["fc_w"][0], params["fc_b"][0])
    i_ref = _ref_tower(params["tables"][1], item_doc, params["conv_w"][1],
                       params["conv_b"][1], params["fc_w"][1], params["fc_b"][1])
    assert u_out.shape == (BATCH, EMB_DIM) and i_out.shape == (BATCH, EMB_DIM)
    assert jnp.allclose(u_out, u_ref, atol=2e-5, rtol=2e-5)
    assert jnp.allclose(i_out, i_ref, atol=2e-5, rtol=2e-5)

    print("KERNEL_OK")
</pallas_src>

<mosaic_0001>
module attributes {stable_mosaic.version = 11 : i64} {
  func.func @deepconn_fused_kernel(%arg0: memref<2x128x1xi32, #tpu.memory_space<vmem>>, %arg1: memref<2x100x32xf32, #tpu.memory_space<vmem>>, %arg2: memref<2x3x32x32xf32, #tpu.memory_space<vmem>>, %arg3: memref<2x1x32xf32, #tpu.memory_space<vmem>>, %arg4: memref<2x32x32xf32, #tpu.memory_space<vmem>>, %arg5: memref<2x1x32xf32, #tpu.memory_space<vmem>>, %arg6: memref<2x2x32xf32, #tpu.memory_space<vmem>>) attributes {dimension_semantics = [], scalar_prefetch = 0 : i64, scratch_operands = 0 : i64, tpu.core_type = #tpu.core_type<tc>} {
    %0 = tpu.iota {dimensions = array<i32: 1>} : vector<128x100xi32>
    %1 = tpu.iota {dimensions = array<i32: 1>} : vector<2x64x32xi32>
    %c62_i32 = arith.constant 62 : i32
    %2 = vector.broadcast %c62_i32 : i32 to vector<2x64x32xi32>
    %3 = arith.cmpi slt, %1, %2 : vector<2x64x32xi32>
    %c0 = arith.constant 0 : index
    %c0_0 = arith.constant 0 : index
    %c0_1 = arith.constant 0 : index
    %4 = vector.load %arg0[%c0, %c0_0, %c0_1] : memref<2x128x1xi32, #tpu.memory_space<vmem>>, vector<1x128x1xi32>
    %5 = vector.shape_cast %4 : vector<1x128x1xi32> to vector<128x1xi32>
    %6 = vector.broadcast %5 : vector<128x1xi32> to vector<128x100xi32>
    %7 = arith.cmpi eq, %0, %6 : vector<128x100xi32>
    %cst = arith.constant 1.000000e+00 : f32
    %cst_2 = arith.constant 0.000000e+00 : f32
    %8 = vector.broadcast %cst : f32 to vector<128x100xf32>
    %9 = vector.broadcast %cst_2 : f32 to vector<128x100xf32>
    %10 = arith.select %7, %8, %9 : vector<128x100xi1>, vector<128x100xf32>
    %c0_3 = arith.constant 0 : index
    %c0_4 = arith.constant 0 : index
    %c0_5 = arith.constant 0 : index
    %11 = vector.load %arg1[%c0_3, %c0_4, %c0_5] : memref<2x100x32xf32, #tpu.memory_space<vmem>>, vector<1x100x32xf32>
    %12 = vector.shape_cast %11 : vector<1x100x32xf32> to vector<100x32xf32>
    %cst_6 = arith.constant dense<0.000000e+00> : vector<128x32xf32>
    %13 = tpu.matmul %10, %12, %cst_6 {dimension_numbers = #tpu.dot_dimension_numbers<[1], [0], [0], [1], [0, 0, 1, 1], [], []>} : vector<128x100xf32>, vector<100x32xf32>, vector<128x32xf32> -> vector<128x32xf32>
    %cst_7 = arith.constant 0.000000e+00 : f32
    %14 = vector.broadcast %cst_7 : f32 to vector<128x32xf32>
    %c0_8 = arith.constant 0 : index
    %c0_9 = arith.constant 0 : index
    %c0_10 = arith.constant 0 : index
    %c0_11 = arith.constant 0 : index
    %15 = vector.load %arg2[%c0_8, %c0_9, %c0_10, %c0_11] : memref<2x3x32x32xf32, #tpu.memory_space<vmem>>, vector<1x1x32x32xf32>
    %16 = vector.shape_cast %15 : vector<1x1x32x32xf32> to vector<32x32xf32>
    %cst_12 = arith.constant dense<0.000000e+00> : vector<128x32xf32>
    %17 = tpu.matmul %13, %16, %cst_12 {dimension_numbers = #tpu.dot_dimension_numbers<[1], [0], [0], [1], [0, 0, 1, 1], [], []>} : vector<128x32xf32>, vector<32x32xf32>, vector<128x32xf32> -> vector<128x32xf32>
    %18 = arith.addf %14, %17 : vector<128x32xf32>
    %c127_i32 = arith.constant 127 : i32
    %19 = tpu.dynamic_rotate %13 by %c127_i32 dim 0 : vector<128x32xf32>, i32 -> vector<128x32xf32>
    %c0_13 = arith.constant 0 : index
    %c1 = arith.constant 1 : index
    %c0_14 = arith.constant 0 : index
    %c0_15 = arith.constant 0 : index
    %20 = vector.load %arg2[%c0_13, %c1, %c0_14, %c0_15] : memref<2x3x32x32xf32, #tpu.memory_space<vmem>>, vector<1x1x32x32xf32>
    %21 = vector.shape_cast %20 : vector<1x1x32x32xf32> to vector<32x32xf32>
    %cst_16 = arith.constant dense<0.000000e+00> : vector<128x32xf32>
    %22 = tpu.matmul %19, %21, %cst_16 {dimension_numbers = #tpu.dot_dimension_numbers<[1], [0], [0], [1], [0, 0, 1, 1], [], []>} : vector<128x32xf32>, vector<32x32xf32>, vector<128x32xf32> -> vector<128x32xf32>
    %23 = arith.addf %18, %22 : vector<128x32xf32>
    %c126_i32 = arith.constant 126 : i32
    %24 = tpu.dynamic_rotate %13 by %c126_i32 dim 0 : vector<128x32xf32>, i32 -> vector<128x32xf32>
    %c0_17 = arith.constant 0 : index
    %c2 = arith.constant 2 : index
    %c0_18 = arith.constant 0 : index
    %c0_19 = arith.constant 0 : index
    %25 = vector.load %arg2[%c0_17, %c2, %c0_18, %c0_19] : memref<2x3x32x32xf32, #tpu.memory_space<vmem>>, vector<1x1x32x32xf32>
    %26 = vector.shape_cast %25 : vector<1x1x32x32xf32> to vector<32x32xf32>
    %cst_20 = arith.constant dense<0.000000e+00> : vector<128x32xf32>
    %27 = tpu.matmul %24, %26, %cst_20 {dimension_numbers = #tpu.dot_dimension_numbers<[1], [0], [0], [1], [0, 0, 1, 1], [], []>} : vector<128x32xf32>, vector<32x32xf32>, vector<128x32xf32> -> vector<128x32xf32>
    %28 = arith.addf %23, %27 : vector<128x32xf32>
    %c0_21 = arith.constant 0 : index
    %c0_22 = arith.constant 0 : index
    %c0_23 = arith.constant 0 : index
    %29 = vector.load %arg3[%c0_21, %c0_22, %c0_23] : memref<2x1x32xf32, #tpu.memory_space<vmem>>, vector<1x1x32xf32>
    %30 = vector.shape_cast %29 : vector<1x1x32xf32> to vector<1x32xf32>
    %31 = vector.broadcast %30 : vector<1x32xf32> to vector<128x32xf32>
    %32 = arith.addf %28, %31 : vector<128x32xf32>
    %cst_24 = arith.constant 0.000000e+00 : f32
    %33 = vector.broadcast %cst_24 : f32 to vector<128x32xf32>
    %34 = arith.maximumf %32, %33 : vector<128x32xf32>
    %35 = vector.shape_cast %34 : vector<128x32xf32> to vector<2x64x32xf32>
    %cst_25 = arith.constant 0xFF800000 : f32
    %36 = vector.broadcast %cst_25 : f32 to vector<2x64x32xf32>
    %37 = arith.select %3, %35, %36 : vector<2x64x32xi1>, vector<2x64x32xf32>
    %cst_26 = arith.constant dense<0xFF800000> : vector<2x32xf32>
    %38 = vector.multi_reduction <maximumf>, %37, %cst_26 [1] : vector<2x64x32xf32> to vector<2x32xf32>
    %c0_27 = arith.constant 0 : index
    %c0_28 = arith.constant 0 : index
    %c0_29 = arith.constant 0 : index
    %39 = vector.load %arg4[%c0_27, %c0_28, %c0_29] : memref<2x32x32xf32, #tpu.memory_space<vmem>>, vector<1x32x32xf32>
    %40 = vector.shape_cast %39 : vector<1x32x32xf32> to vector<32x32xf32>
    %cst_30 = arith.constant dense<0.000000e+00> : vector<2x32xf32>
    %41 = tpu.matmul %38, %40, %cst_30 {dimension_numbers = #tpu.dot_dimension_numbers<[1], [0], [0], [1], [0, 0, 1, 1], [], []>} : vector<2x32xf32>, vector<32x32xf32>, vector<2x32xf32> -> vector<2x32xf32>
    %c0_31 = arith.constant 0 : index
    %c0_32 = arith.constant 0 : index
    %c0_33 = arith.constant 0 : index
    %42 = vector.load %arg5[%c0_31, %c0_32, %c0_33] : memref<2x1x32xf32, #tpu.memory_space<vmem>>, vector<1x1x32xf32>
    %43 = vector.shape_cast %42 : vector<1x1x32xf32> to vector<1x32xf32>
    %44 = vector.broadcast %43 : vector<1x32xf32> to vector<2x32xf32>
    %45 = arith.addf %41, %44 : vector<2x32xf32>
    %c0_34 = arith.constant 0 : index
    %c0_35 = arith.constant 0 : index
    %c0_36 = arith.constant 0 : index
    %46 = vector.load %arg6[%c0_34, %c0_35, %c0_36] : memref<2x2x32xf32, #tpu.memory_space<vmem>>, vector<1x2x32xf32>
    %47 = vector.shape_cast %46 : vector<1x2x32xf32> to vector<2x32xf32>
    %48 = vector.shape_cast %45 : vector<2x32xf32> to vector<1x2x32xf32>
    tpu.vector_store %arg6[%c0_34, %c0_35, %c0_36], %48 {strides = array<i32>} : memref<2x2x32xf32, #tpu.memory_space<vmem>>, vector<1x2x32xf32>,
    %c1_37 = arith.constant 1 : index
    %c0_38 = arith.constant 0 : index
    %c0_39 = arith.constant 0 : index
    %49 = vector.load %arg0[%c1_37, %c0_38, %c0_39] : memref<2x128x1xi32, #tpu.memory_space<vmem>>, vector<1x128x1xi32>
    %50 = vector.shape_cast %49 : vector<1x128x1xi32> to vector<128x1xi32>
    %51 = vector.broadcast %50 : vector<128x1xi32> to vector<128x100xi32>
    %52 = arith.cmpi eq, %0, %51 : vector<128x100xi32>
    %cst_40 = arith.constant 1.000000e+00 : f32
    %cst_41 = arith.constant 0.000000e+00 : f32
    %53 = vector.broadcast %cst_40 : f32 to vector<128x100xf32>
    %54 = vector.broadcast %cst_41 : f32 to vector<128x100xf32>
    %55 = arith.select %52, %53, %54 : vector<128x100xi1>, vector<128x100xf32>
    %c1_42 = arith.constant 1 : index
    %c0_43 = arith.constant 0 : index
    %c0_44 = arith.constant 0 : index
    %56 = vector.load %arg1[%c1_42, %c0_43, %c0_44] : memref<2x100x32xf32, #tpu.memory_space<vmem>>, vector<1x100x32xf32>
    %57 = vector.shape_cast %56 : vector<1x100x32xf32> to vector<100x32xf32>
    %cst_45 = arith.constant dense<0.000000e+00> : vector<128x32xf32>
    %58 = tpu.matmul %55, %57, %cst_45 {dimension_numbers = #tpu.dot_dimension_numbers<[1], [0], [0], [1], [0, 0, 1, 1], [], []>} : vector<128x100xf32>, vector<100x32xf32>, vector<128x32xf32> -> vector<128x32xf32>
    %cst_46 = arith.constant 0.000000e+00 : f32
    %59 = vector.broadcast %cst_46 : f32 to vector<128x32xf32>
    %c1_47 = arith.constant 1 : index
    %c0_48 = arith.constant 0 : index
    %c0_49 = arith.constant 0 : index
    %c0_50 = arith.constant 0 : index
    %60 = vector.load %arg2[%c1_47, %c0_48, %c0_49, %c0_50] : memref<2x3x32x32xf32, #tpu.memory_space<vmem>>, vector<1x1x32x32xf32>
    %61 = vector.shape_cast %60 : vector<1x1x32x32xf32> to vector<32x32xf32>
    %cst_51 = arith.constant dense<0.000000e+00> : vector<128x32xf32>
    %62 = tpu.matmul %58, %61, %cst_51 {dimension_numbers = #tpu.dot_dimension_numbers<[1], [0], [0], [1], [0, 0, 1, 1], [], []>} : vector<128x32xf32>, vector<32x32xf32>, vector<128x32xf32> -> vector<128x32xf32>
    %63 = arith.addf %59, %62 : vector<128x32xf32>
    %c127_i32_52 = arith.constant 127 : i32
    %64 = tpu.dynamic_rotate %58 by %c127_i32_52 dim 0 : vector<128x32xf32>, i32 -> vector<128x32xf32>
    %c1_53 = arith.constant 1 : index
    %c1_54 = arith.constant 1 : index
    %c0_55 = arith.constant 0 : index
    %c0_56 = arith.constant 0 : index
    %65 = vector.load %arg2[%c1_53, %c1_54, %c0_55, %c0_56] : memref<2x3x32x32xf32, #tpu.memory_space<vmem>>, vector<1x1x32x32xf32>
    %66 = vector.shape_cast %65 : vector<1x1x32x32xf32> to vector<32x32xf32>
    %cst_57 = arith.constant dense<0.000000e+00> : vector<128x32xf32>
    %67 = tpu.matmul %64, %66, %cst_57 {dimension_numbers = #tpu.dot_dimension_numbers<[1], [0], [0], [1], [0, 0, 1, 1], [], []>} : vector<128x32xf32>, vector<32x32xf32>, vector<128x32xf32> -> vector<128x32xf32>
    %68 = arith.addf %63, %67 : vector<128x32xf32>
    %c126_i32_58 = arith.constant 126 : i32
    %69 = tpu.dynamic_rotate %58 by %c126_i32_58 dim 0 : vector<128x32xf32>, i32 -> vector<128x32xf32>
    %c1_59 = arith.constant 1 : index
    %c2_60 = arith.constant 2 : index
    %c0_61 = arith.constant 0 : index
    %c0_62 = arith.constant 0 : index
    %70 = vector.load %arg2[%c1_59, %c2_60, %c0_61, %c0_62] : memref<2x3x32x32xf32, #tpu.memory_space<vmem>>, vector<1x1x32x32xf32>
    %71 = vector.shape_cast %70 : vector<1x1x32x32xf32> to vector<32x32xf32>
    %cst_63 = arith.constant dense<0.000000e+00> : vector<128x32xf32>
    %72 = tpu.matmul %69, %71, %cst_63 {dimension_numbers = #tpu.dot_dimension_numbers<[1], [0], [0], [1], [0, 0, 1, 1], [], []>} : vector<128x32xf32>, vector<32x32xf32>, vector<128x32xf32> -> vector<128x32xf32>
    %73 = arith.addf %68, %72 : vector<128x32xf32>
    %c1_64 = arith.constant 1 : index
    %c0_65 = arith.constant 0 : index
    %c0_66 = arith.constant 0 : index
    %74 = vector.load %arg3[%c1_64, %c0_65, %c0_66] : memref<2x1x32xf32, #tpu.memory_space<vmem>>, vector<1x1x32xf32>
    %75 = vector.shape_cast %74 : vector<1x1x32xf32> to vector<1x32xf32>
    %76 = vector.broadcast %75 : vector<1x32xf32> to vector<128x32xf32>
    %77 = arith.addf %73, %76 : vector<128x32xf32>
    %cst_67 = arith.constant 0.000000e+00 : f32
    %78 = vector.broadcast %cst_67 : f32 to vector<128x32xf32>
    %79 = arith.maximumf %77, %78 : vector<128x32xf32>
    %80 = vector.shape_cast %79 : vector<128x32xf32> to vector<2x64x32xf32>
    %cst_68 = arith.constant 0xFF800000 : f32
    %81 = vector.broadcast %cst_68 : f32 to vector<2x64x32xf32>
    %82 = arith.select %3, %80, %81 : vector<2x64x32xi1>, vector<2x64x32xf32>
    %cst_69 = arith.constant dense<0xFF800000> : vector<2x32xf32>
    %83 = vector.multi_reduction <maximumf>, %82, %cst_69 [1] : vector<2x64x32xf32> to vector<2x32xf32>
    %c1_70 = arith.constant 1 : index
    %c0_71 = arith.constant 0 : index
    %c0_72 = arith.constant 0 : index
    %84 = vector.load %arg4[%c1_70, %c0_71, %c0_72] : memref<2x32x32xf32, #tpu.memory_space<vmem>>, vector<1x32x32xf32>
    %85 = vector.shape_cast %84 : vector<1x32x32xf32> to vector<32x32xf32>
    %cst_73 = arith.constant dense<0.000000e+00> : vector<2x32xf32>
    %86 = tpu.matmul %83, %85, %cst_73 {dimension_numbers = #tpu.dot_dimension_numbers<[1], [0], [0], [1], [0, 0, 1, 1], [], []>} : vector<2x32xf32>, vector<32x32xf32>, vector<2x32xf32> -> vector<2x32xf32>
    %c1_74 = arith.constant 1 : index
    %c0_75 = arith.constant 0 : index
    %c0_76 = arith.constant 0 : index
    %87 = vector.load %arg5[%c1_74, %c0_75, %c0_76] : memref<2x1x32xf32, #tpu.memory_space<vmem>>, vector<1x1x32xf32>
    %88 = vector.shape_cast %87 : vector<1x1x32xf32> to vector<1x32xf32>
    %89 = vector.broadcast %88 : vector<1x32xf32> to vector<2x32xf32>
    %90 = arith.addf %86, %89 : vector<2x32xf32>
    %c1_77 = arith.constant 1 : index
    %c0_78 = arith.constant 0 : index
    %c0_79 = arith.constant 0 : index
    %91 = vector.load %arg6[%c1_77, %c0_78, %c0_79] : memref<2x2x32xf32, #tpu.memory_space<vmem>>, vector<1x2x32xf32>
    %92 = vector.shape_cast %91 : vector<1x2x32xf32> to vector<2x32xf32>
    %93 = vector.shape_cast %90 : vector<2x32xf32> to vector<1x2x32xf32>
    tpu.vector_store %arg6[%c1_77, %c0_78, %c0_79], %93 {strides = array<i32>} : memref<2x2x32xf32, #tpu.memory_space<vmem>>, vector<1x2x32xf32>,
    return
  }
}

</mosaic_0001>

<llo_original>
// kernel: encoder_deepconn_forward.1
$region0: #{encoder_deepconn_forward.1}
  #allocation0 [shape = 'u32[]', space=smem, size = 0x4, offset = 0x4, fixed_abs, tag = 'smem constant byte address 0x4 - core index']
  #allocation1 [shape = 'u32[144,128]{1,0:T(1,128)}', space=vmem, size = 0x12000, scoped, tag = 'internal scratch']
  %s0 = inlined_call_operand.vmem [shape: s32[2,128,1], index: 0, kind: input, shape index: {}]
  %s1 = inlined_call_operand.vmem [shape: f32[2,100,32], index: 1, kind: input, shape index: {}]
  %s2 = inlined_call_operand.vmem [shape: f32[2,3,32,32], index: 2, kind: input, shape index: {}]
  %s3 = inlined_call_operand.vmem [shape: f32[2,1,32], index: 3, kind: input, shape index: {}]
  %s4 = inlined_call_operand.vmem [shape: f32[2,32,32], index: 4, kind: input, shape index: {}]
  %s5 = inlined_call_operand.vmem [shape: f32[2,1,32], index: 5, kind: input, shape index: {}]
  %s6 = inlined_call_operand.vmem [shape: f32[2,2,32], index: 6, kind: output, shape index: {}]
  %s7 = sld [smem:[#allocation0]]
  $region34: #{encoder_deepconn_forward.1} parent=0
    _
  %s9 = ssub.s32 1, %s7
  %s10 = scalar_select 0, %s9, %s7
  // Predicated region
  $region2: #{encoder_deepconn_forward.1} parent=0 // pred_check
    _
  $region3: #{encoder_deepconn_forward.1} parent=0 // pred_check_branch
    %12 = sbr.rel (0) target = $region5
  $region4: #{encoder_deepconn_forward.1} parent=0 // pred_region
    _
  $region5: #{encoder_deepconn_forward.1} parent=0 // pred_fallthru
    _
  // Predicated region
  $region6: #{encoder_deepconn_forward.1} parent=0 // pred_check
    _
  $region7: #{encoder_deepconn_forward.1} parent=0 // pred_check_branch
    %14 = sbr.rel (0) target = $region9
  $region8: #{encoder_deepconn_forward.1} parent=0 // pred_region
    _
  $region9: #{encoder_deepconn_forward.1} parent=0 // pred_fallthru
    _
  // Predicated region
  $region10: #{encoder_deepconn_forward.1} parent=0 // pred_check
    _
  $region11: #{encoder_deepconn_forward.1} parent=0 // pred_check_branch
    %16 = sbr.rel (0) target = $region13
  $region12: #{encoder_deepconn_forward.1} parent=0 // pred_region
    _
  $region13: #{encoder_deepconn_forward.1} parent=0 // pred_fallthru
    _
  // Predicated region
  $region14: #{encoder_deepconn_forward.1} parent=0 // pred_check
    _
  $region15: #{encoder_deepconn_forward.1} parent=0 // pred_check_branch
    %18 = sbr.rel (0) target = $region17
  $region16: #{encoder_deepconn_forward.1} parent=0 // pred_region
    _
  $region17: #{encoder_deepconn_forward.1} parent=0 // pred_fallthru
    _
  // Predicated region
  $region18: #{encoder_deepconn_forward.1} parent=0 // pred_check
    _
  $region19: #{encoder_deepconn_forward.1} parent=0 // pred_check_branch
    %20 = sbr.rel (0) target = $region21
  $region20: #{encoder_deepconn_forward.1} parent=0 // pred_region
    _
  $region21: #{encoder_deepconn_forward.1} parent=0 // pred_fallthru
    _
  // Predicated region
  $region22: #{encoder_deepconn_forward.1} parent=0 // pred_check
    _
  $region23: #{encoder_deepconn_forward.1} parent=0 // pred_check_branch
    %22 = sbr.rel (0) target = $region25
  $region24: #{encoder_deepconn_forward.1} parent=0 // pred_region
    _
  $region25: #{encoder_deepconn_forward.1} parent=0 // pred_fallthru
    _
  %v23 = vlaneseq
  %v24 = vand.u32 %v23, 127
  %v25 = vlaneseq
  %v26 = vshrl.u32 %v25, 7
  %v27 = vadd.s32 %v26, 8
  %v28 = vadd.s32 %v26, 16
  %v29 = vadd.s32 %v26, 24
  %v30 = vadd.s32 %v26, 32
  %v31 = vadd.s32 %v26, 40
  %v32 = vadd.s32 %v26, 48
  %v33 = vadd.s32 %v26, 56
  %vm34 = vcmp.lt.s32.totalorder %v26, 62
  %vm35 = vcmp.lt.s32.totalorder %v27, 62
  %vm36 = vcmp.lt.s32.totalorder %v28, 62
  %vm37 = vcmp.lt.s32.totalorder %v29, 62
  %vm38 = vcmp.lt.s32.totalorder %v30, 62
  %vm39 = vcmp.lt.s32.totalorder %v31, 62
  %vm40 = vcmp.lt.s32.totalorder %v32, 62
  %vm41 = vcmp.lt.s32.totalorder %v33, 62
  %v42 = vld [vmem:[%s0] sm:$0xff]
  %v43 = vld [vmem:[%s0 + $0x8] sm:$0xff]
  %v44 = vld [vmem:[%s0 + $0x10] sm:$0xff]
  %v45 = vld [vmem:[%s0 + $0x18] sm:$0xff]
  %v46 = vld [vmem:[%s0 + $0x20] sm:$0xff]
  %v47 = vld [vmem:[%s0 + $0x28] sm:$0xff]
  %v48 = vld [vmem:[%s0 + $0x30] sm:$0xff]
  %v49 = vld [vmem:[%s0 + $0x38] sm:$0xff]
  %v50 = vld [vmem:[%s0 + $0x40] sm:$0xff]
  %v51 = vld [vmem:[%s0 + $0x48] sm:$0xff]
  %v52 = vld [vmem:[%s0 + $0x50] sm:$0xff]
  %v53 = vld [vmem:[%s0 + $0x58] sm:$0xff]
  %v54 = vld [vmem:[%s0 + $0x60] sm:$0xff]
  %v55 = vld [vmem:[%s0 + $0x68] sm:$0xff]
  %v56 = vld [vmem:[%s0 + $0x70] sm:$0xff]
  %v57 = vld [vmem:[%s0 + $0x78] sm:$0xff]
  %58 = vset.pattern.permute.xlu0 0
  %59 = vperm.xlu0 %58, %v42
  %v60 = vpop.permute.xlu0 %59
  %61 = vset.pattern.permute.xlu0 0
  %62 = vperm.xlu0 %61, %v43
  %v63 = vpop.permute.xlu0 %62
  %64 = vset.pattern.permute.xlu0 0
  %65 = vperm.xlu0 %64, %v44
  %v66 = vpop.permute.xlu0 %65
  %67 = vset.pattern.permute.xlu0 0
  %68 = vperm.xlu0 %67, %v45
  %v69 = vpop.permute.xlu0 %68
  %70 = vset.pattern.permute.xlu0 0
  %71 = vperm.xlu0 %70, %v46
  %v72 = vpop.permute.xlu0 %71
  %73 = vset.pattern.permute.xlu0 0
  %74 = vperm.xlu0 %73, %v47
  %v75 = vpop.permute.xlu0 %74
  %76 = vset.pattern.permute.xlu0 0
  %77 = vperm.xlu0 %76, %v48
  %v78 = vpop.permute.xlu0 %77
  %79 = vset.pattern.permute.xlu0 0
  %80 = vperm.xlu0 %79, %v49
  %v81 = vpop.permute.xlu0 %80
  %82 = vset.pattern.permute.xlu0 0
  %83 = vperm.xlu0 %82, %v50
  %v84 = vpop.permute.xlu0 %83
  %85 = vset.pattern.permute.xlu0 0
  %86 = vperm.xlu0 %85, %v51
  %v87 = vpop.permute.xlu0 %86
  %88 = vset.pattern.permute.xlu0 0
  %89 = vperm.xlu0 %88, %v52
  %v90 = vpop.permute.xlu0 %89
  %91 = vset.pattern.permute.xlu0 0
  %92 = vperm.xlu0 %91, %v53
  %v93 = vpop.permute.xlu0 %92
  %94 = vset.pattern.permute.xlu0 0
  %95 = vperm.xlu0 %94, %v54
  %v96 = vpop.permute.xlu0 %95
  %97 = vset.pattern.permute.xlu0 0
  %98 = vperm.xlu0 %97, %v55
  %v99 = vpop.permute.xlu0 %98
  %100 = vset.pattern.permute.xlu0 0
  %101 = vperm.xlu0 %100, %v56
  %v102 = vpop.permute.xlu0 %101
  %103 = vset.pattern.permute.xlu0 0
  %104 = vperm.xlu0 %103, %v57
  %v105 = vpop.permute.xlu0 %104
  %vm106 = vcmp.eq.s32.totalorder %v24, %v60
  %vm107 = vcmp.eq.s32.totalorder %v24, %v63
  %vm108 = vcmp.eq.s32.totalorder %v24, %v66
  %vm109 = vcmp.eq.s32.totalorder %v24, %v69
  %vm110 = vcmp.eq.s32.totalorder %v24, %v72
  %vm111 = vcmp.eq.s32.totalorder %v24, %v75
  %vm112 = vcmp.eq.s32.totalorder %v24, %v78
  %vm113 = vcmp.eq.s32.totalorder %v24, %v81
  %vm114 = vcmp.eq.s32.totalorder %v24, %v84
  %vm115 = vcmp.eq.s32.totalorder %v24, %v87
  %vm116 = vcmp.eq.s32.totalorder %v24, %v90
  %vm117 = vcmp.eq.s32.totalorder %v24, %v93
  %vm118 = vcmp.eq.s32.totalorder %v24, %v96
  %vm119 = vcmp.eq.s32.totalorder %v24, %v99
  %vm120 = vcmp.eq.s32.totalorder %v24, %v102
  %vm121 = vcmp.eq.s32.totalorder %v24, %v105
  %v122 = vsel %vm106, 1.0, 0.0
  %v123 = vsel %vm107, 1.0, 0.0
  %v124 = vsel %vm108, 1.0, 0.0
  %v125 = vsel %vm109, 1.0, 0.0
  %v126 = vsel %vm110, 1.0, 0.0
  %v127 = vsel %vm111, 1.0, 0.0
  %v128 = vsel %vm112, 1.0, 0.0
  %v129 = vsel %vm113, 1.0, 0.0
  %v130 = vsel %vm114, 1.0, 0.0
  %v131 = vsel %vm115, 1.0, 0.0
  %v132 = vsel %vm116, 1.0, 0.0
  %v133 = vsel %vm117, 1.0, 0.0
  %v134 = vsel %vm118, 1.0, 0.0
  %v135 = vsel %vm119, 1.0, 0.0
  %v136 = vsel %vm120, 1.0, 0.0
  %v137 = vsel %vm121, 1.0, 0.0
  %v138 = vld [vmem:[%s1] sm:$0xff]
  %v139 = vld [vmem:[%s1 + $0x8] sm:$0xff]
  %v140 = vld [vmem:[%s1 + $0x10] sm:$0xff]
  %v141 = vld [vmem:[%s1 + $0x18] sm:$0xff]
  %v142 = vld [vmem:[%s1 + $0x20] sm:$0xff]
  %v143 = vld [vmem:[%s1 + $0x28] sm:$0xff]
  %v144 = vld [vmem:[%s1 + $0x30] sm:$0xff]
  %v145 = vld [vmem:[%s1 + $0x38] sm:$0xff]
  %v146 = vld [vmem:[%s1 + $0x40] sm:$0xff]
  %v147 = vld [vmem:[%s1 + $0x48] sm:$0xff]
  %v148 = vld [vmem:[%s1 + $0x50] sm:$0xff]
  %v149 = vld [vmem:[%s1 + $0x58] sm:$0xff]
  %v150 = vld [vmem:[%s1 + $0x60] sm:$0xf]
  %vm151 = vcmask 818176
  %v153 = vsel %vm151, %v122, 0
  %v156 = vsel %vm151, %v123, 0
  %v159 = vsel %vm151, %v124, 0
  %v162 = vsel %vm151, %v125, 0
  %v165 = vsel %vm151, %v126, 0
  %v168 = vsel %vm151, %v127, 0
  %v171 = vsel %vm151, %v128, 0
  %v174 = vsel %vm151, %v129, 0
  %v177 = vsel %vm151, %v130, 0
  %v180 = vsel %vm151, %v131, 0
  %v183 = vsel %vm151, %v132, 0
  %v186 = vsel %vm151, %v133, 0
  %v189 = vsel %vm151, %v134, 0
  %v192 = vsel %vm151, %v135, 0
  %v195 = vsel %vm151, %v136, 0
  %v198 = vsel %vm151, %v137, 0
  %vm200 = vcmask 1043456
  %v202 = vsel %vm200, %v150, 0
  %204 = vmatprep.subr.mxu0 0.0
  %205 = vmatpush1.msra.mxu0 %v138
  %206 = vmatprep.subr.mxu0 0.0
  %207 = vmatpush1.msra.mxu0 %v139
  %208 = vmatprep.subr.mxu0 0.0
  %209 = vmatpush1.msra.mxu0 %v140
  %210 = vmatprep.subr.mxu0 0.0
  %211 = vmatpush1.msra.mxu0 %v141
  %212 = vmatprep.subr.mxu0 0.0
  %213 = vmatpush1.msra.mxu0 %v142
  %214 = vmatprep.subr.mxu0 0.0
  %215 = vmatpush1.msra.mxu0 %v143
  %216 = vmatprep.subr.mxu0 0.0
  %217 = vmatpush1.msra.mxu0 %v144
  %218 = vmatprep.subr.mxu0 0.0
  %219 = vmatpush1.msra.mxu0 %v145
  %220 = vmatprep.subr.mxu0 0.0
  %221 = vmatpush1.msra.mxu0 %v146
  %222 = vmatprep.subr.mxu0 0.0
  %223 = vmatpush1.msra.mxu0 %v147
  %224 = vmatprep.subr.mxu0 0.0
  %225 = vmatpush1.msra.mxu0 %v148
  %226 = vmatprep.subr.mxu0 0.0
  %227 = vmatpush1.msra.mxu0 %v149
  %228 = vmatprep.subr.mxu0 0.0
  %229 = vmatpush1.msra.mxu0 %v202
  %230 = vmatprep.subr.mxu0 0.0
  %231 = vmatpush1.msra.mxu0 0.0
  %232 = vmatprep.subr.mxu0 0.0
  %233 = vmatpush1.msra.mxu0 0.0
  %234 = vmatprep.subr.mxu0 0.0
  %235 = vmatpush1.msra.mxu0 0.0
  %236 = vmatprep.subr.mxu0 0.0
  %237 = vmatpush1.msra.mxu0 0.0
  %238 = vmatprep.subr.mxu0 0.0
  %239 = vmatpush1.msra.mxu0 0.0
  %240 = vmatprep.subr.mxu0 0.0
  %241 = vmatpush1.msra.mxu0 0.0
  %242 = vmatprep.subr.mxu0 0.0
  %243 = vmatpush1.msra.mxu0 0.0
  %244 = vmatprep.subr.mxu0 0.0
  %245 = vmatpush1.msra.mxu0 0.0
  %246 = vmatprep.subr.mxu0 0.0
  %247 = vmatpush1.msra.mxu0 0.0
  %248 = vmatprep.subr.mxu0 0.0
  %249 = vmatpush1.msra.mxu0 0.0
  %250 = vmatprep.subr.mxu0 0.0
  %251 = vmatpush1.msra.mxu0 0.0
  %252 = vmatprep.subr.mxu0 0.0
  %253 = vmatpush1.msra.mxu0 0.0
  %254 = vmatprep.subr.mxu0 0.0
  %255 = vmatpush1.msra.mxu0 0.0
  %256 = vmatprep.subr.mxu0 0.0
  %257 = vmatpush1.msra.mxu0 0.0
  %258 = vmatprep.subr.mxu0 0.0
  %259 = vmatpush1.msra.mxu0 0.0
  %260 = vmatprep.subr.mxu0 0.0
  %261 = vmatpush1.msra.mxu0 0.0
  %262 = vmatprep.subr.mxu0 0.0
  %263 = vmatpush1.msra.mxu0 0.0
  %264 = vmatprep.subr.mxu0 0.0
  %265 = vmatpush1.msra.mxu0 0.0
  %266 = vmatprep.subr.mxu0 0.0
  %267 = vmatpush1.msra.mxu0 0.0
  %268 = vmatprep.mubr.f32.mxu0 0.0
  %269 = vmatmul.mubr.f32.gmra.mrb[0].mxu0 %v153
  %v270 = vpop.f32.mrb[0].mxu0
  %v271 = vadd.f32 0.0, %v270
  %v272 = vpop.f32.mrb[0].mxu0
  %273 = vmatprep.mubr.f32.mxu0 0.0
  %274 = vmatmul.mubr.f32.gmra.mrb[0].mxu0 %v156
  %v275 = vpop.f32.mrb[0].mxu0
  %v276 = vadd.f32 0.0, %v275
  %v277 = vpop.f32.mrb[0].mxu0
  %278 = vmatprep.mubr.f32.mxu0 0.0
  %279 = vmatmul.mubr.f32.gmra.mrb[0].mxu0 %v159
  %v280 = vpop.f32.mrb[0].mxu0
  %v281 = vadd.f32 0.0, %v280
  %v282 = vpop.f32.mrb[0].mxu0
  %283 = vmatprep.mubr.f32.mxu0 0.0
  %284 = vmatmul.mubr.f32.gmra.mrb[0].mxu0 %v162
  %v285 = vpop.f32.mrb[0].mxu0
  %v286 = vadd.f32 0.0, %v285
  %v287 = vpop.f32.mrb[0].mxu0
  %288 = vmatprep.mubr.f32.mxu0 0.0
  %289 = vmatmul.mubr.f32.gmra.mrb[0].mxu0 %v165
  %v290 = vpop.f32.mrb[0].mxu0
  %v291 = vadd.f32 0.0, %v290
  %v292 = vpop.f32.mrb[0].mxu0
  %293 = vmatprep.mubr.f32.mxu0 0.0
  %294 = vmatmul.mubr.f32.gmra.mrb[0].mxu0 %v168
  %v295 = vpop.f32.mrb[0].mxu0
  %v296 = vadd.f32 0.0, %v295
  %v297 = vpop.f32.mrb[0].mxu0
  %298 = vmatprep.mubr.f32.mxu0 0.0
  %299 = vmatmul.mubr.f32.gmra.mrb[0].mxu0 %v171
  %v300 = vpop.f32.mrb[0].mxu0
  %v301 = vadd.f32 0.0, %v300
  %v302 = vpop.f32.mrb[0].mxu0
  %303 = vmatprep.mubr.f32.mxu0 0.0
  %304 = vmatmul.mubr.f32.gmra.mrb[0].mxu0 %v174
  %v305 = vpop.f32.mrb[0].mxu0
  %v306 = vadd.f32 0.0, %v305
  %v307 = vpop.f32.mrb[0].mxu0
  %308 = vmatprep.mubr.f32.mxu0 0.0
  %309 = vmatmul.mubr.f32.gmra.mrb[0].mxu0 %v177
  %v310 = vpop.f32.mrb[0].mxu0
  %v311 = vadd.f32 0.0, %v310
  %v312 = vpop.f32.mrb[0].mxu0
  %313 = vmatprep.mubr.f32.mxu0 0.0
  %314 = vmatmul.mubr.f32.gmra.mrb[0].mxu0 %v180
  %v315 = vpop.f32.mrb[0].mxu0
  %v316 = vadd.f32 0.0, %v315
  %v317 = vpop.f32.mrb[0].mxu0
  %318 = vmatprep.mubr.f32.mxu0 0.0
  %319 = vmatmul.mubr.f32.gmra.mrb[0].mxu0 %v183
  %v320 = vpop.f32.mrb[0].mxu0
  %v321 = vadd.f32 0.0, %v320
  %v322 = vpop.f32.mrb[0].mxu0
  %323 = vmatprep.mubr.f32.mxu0 0.0
  %324 = vmatmul.mubr.f32.gmra.mrb[0].mxu0 %v186
  %v325 = vpop.f32.mrb[0].mxu0
  %v326 = vadd.f32 0.0, %v325
  %v327 = vpop.f32.mrb[0].mxu0
  %328 = vmatprep.mubr.f32.mxu0 0.0
  %329 = vmatmul.mubr.f32.gmra.mrb[0].mxu0 %v189
  %v330 = vpop.f32.mrb[0].mxu0
  %v331 = vadd.f32 0.0, %v330
  %v332 = vpop.f32.mrb[0].mxu0
  %333 = vmatprep.mubr.f32.mxu0 0.0
  %334 = vmatmul.mubr.f32.gmra.mrb[0].mxu0 %v192
  %v335 = vpop.f32.mrb[0].mxu0
  %v336 = vadd.f32 0.0, %v335
  %v337 = vpop.f32.mrb[0].mxu0
  %338 = vmatprep.mubr.f32.mxu0 0.0
  %339 = vmatmul.mubr.f32.gmra.mrb[0].mxu0 %v195
  %v340 = vpop.f32.mrb[0].mxu0
  %v341 = vadd.f32 0.0, %v340
  %v342 = vpop.f32.mrb[0].mxu0
  %343 = vmatprep.mubr.f32.mxu0 0.0
  %344 = vmatmul.mubr.f32.gmra.mrb[0].mxu0 %v198
  %v345 = vpop.f32.mrb[0].mxu0
  %v346 = vadd.f32 0.0, %v345
  %v347 = vpop.f32.mrb[0].mxu0
  %348 = vdwg.mxu0
  %v349 = vld [vmem:[%s2] sm:$0xff]
  %v350 = vld [vmem:[%s2 + $0x8] sm:$0xff]
  %v351 = vld [vmem:[%s2 + $0x10] sm:$0xff]
  %v352 = vld [vmem:[%s2 + $0x18] sm:$0xff]
  %v353 = vrot.slane %v271, 1
  %v354 = vrot.slane %v276, 1
  %v355 = vrot.slane %v281, 1
  %v356 = vrot.slane %v286, 1
  %v357 = vrot.slane %v291, 1
  %v358 = vrot.slane %v296, 1
  %v359 = vrot.slane %v301, 1
  %v360 = vrot.slane %v306, 1
  %v361 = vrot.slane %v311, 1
  %v362 = vrot.slane %v316, 1
  %v363 = vrot.slane %v321, 1
  %v364 = vrot.slane %v326, 1
  %v365 = vrot.slane %v331, 1
  %v366 = vrot.slane %v336, 1
  %v367 = vrot.slane %v341, 1
  %v368 = vrot.slane %v346, 1
  %vm369 = vcmp.lt.s32.totalorder %v26, 7
  %v370 = vsel %vm369, %v367, %v368
  %v371 = vsel %vm369, %v366, %v367
  %v372 = vsel %vm369, %v365, %v366
  %v373 = vsel %vm369, %v364, %v365
  %v374 = vsel %vm369, %v363, %v364
  %v375 = vsel %vm369, %v362, %v363
  %v376 = vsel %vm369, %v361, %v362
  %v377 = vsel %vm369, %v360, %v361
  %v378 = vsel %vm369, %v359, %v360
  %v379 = vsel %vm369, %v358, %v359
  %v380 = vsel %vm369, %v357, %v358
  %v381 = vsel %vm369, %v356, %v357
  %v382 = vsel %vm369, %v355, %v356
  %v383 = vsel %vm369, %v354, %v355
  %v384 = vsel %vm369, %v353, %v354
  %v385 = vsel %vm369, %v368, %v353
  %s386 = scalar_lea.vmem %s2, 32
  %v387 = vld [vmem:[%s386] sm:$0xff]
  %v388 = vld [vmem:[%s386 + $0x8] sm:$0xff]
  %v389 = vld [vmem:[%s386 + $0x10] sm:$0xff]
  %v390 = vld [vmem:[%s386 + $0x18] sm:$0xff]
  %vm391 = vcmask 261120
  %v393 = vsel %vm391, %v384, 0
  %v396 = vsel %vm391, %v383, 0
  %v399 = vsel %vm391, %v382, 0
  %v402 = vsel %vm391, %v381, 0
  %v405 = vsel %vm391, %v380, 0
  %v408 = vsel %vm391, %v379, 0
  %v411 = vsel %vm391, %v378, 0
  %v414 = vsel %vm391, %v377, 0
  %v417 = vsel %vm391, %v376, 0
  %v420 = vsel %vm391, %v375, 0
  %v423 = vsel %vm391, %v374, 0
  %v426 = vsel %vm391, %v373, 0
  %v429 = vsel %vm391, %v372, 0
  %v432 = vsel %vm391, %v371, 0
  %v435 = vsel %vm391, %v370, 0
  %v438 = vsel %vm391, %v385, 0
  %440 = vmatprep.subr.mxu0 0.0
  %441 = vmatpush1.msra.mxu0 %v387
  %442 = vmatprep.subr.mxu0 0.0
  %443 = vmatpush1.msra.mxu0 %v388
  %444 = vmatprep.subr.mxu0 0.0
  %445 = vmatpush1.msra.mxu0 %v389
  %446 = vmatprep.subr.mxu0 0.0
  %447 = vmatpush1.msra.mxu0 %v390
  %448 = vmatprep.subr.mxu0 0.0
  %449 = vmatpush1.msra.mxu0 0.0
  %450 = vmatprep.subr.mxu0 0.0
  %451 = vmatpush1.msra.mxu0 0.0
  %452 = vmatprep.subr.mxu0 0.0
  %453 = vmatpush1.msra.mxu0 0.0
  %454 = vmatprep.subr.mxu0 0.0
  %455 = vmatpush1.msra.mxu0 0.0
  %456 = vmatprep.subr.mxu0 0.0
  %457 = vmatpush1.msra.mxu0 0.0
  %458 = vmatprep.subr.mxu0 0.0
  %459 = vmatpush1.msra.mxu0 0.0
  %460 = vmatprep.subr.mxu0 0.0
  %461 = vmatpush1.msra.mxu0 0.0
  %462 = vmatprep.subr.mxu0 0.0
  %463 = vmatpush1.msra.mxu0 0.0
  %464 = vmatprep.subr.mxu0 0.0
  %465 = vmatpush1.msra.mxu0 0.0
  %466 = vmatprep.subr.mxu0 0.0
  %467 = vmatpush1.msra.mxu0 0.0
  %468 = vmatprep.subr.mxu0 0.0
  %469 = vmatpush1.msra.mxu0 0.0
  %470 = vmatprep.subr.mxu0 0.0
  %471 = vmatpush1.msra.mxu0 0.0
  %472 = vmatprep.subr.mxu0 0.0
  %473 = vmatpush1.msra.mxu0 0.0
  %474 = vmatprep.subr.mxu0 0.0
  %475 = vmatpush1.msra.mxu0 0.0
  %476 = vmatprep.subr.mxu0 0.0
  %477 = vmatpush1.msra.mxu0 0.0
  %478 = vmatprep.subr.mxu0 0.0
  %479 = vmatpush1.msra.mxu0 0.0
  %480 = vmatprep.subr.mxu0 0.0
  %481 = vmatpush1.msra.mxu0 0.0
  %482 = vmatprep.subr.mxu0 0.0
  %483 = vmatpush1.msra.mxu0 0.0
  %484 = vmatprep.subr.mxu0 0.0
  %485 = vmatpush1.msra.mxu0 0.0
  %486 = vmatprep.subr.mxu0 0.0
  %487 = vmatpush1.msra.mxu0 0.0
  %488 = vmatprep.subr.mxu0 0.0
  %489 = vmatpush1.msra.mxu0 0.0
  %490 = vmatprep.subr.mxu0 0.0
  %491 = vmatpush1.msra.mxu0 0.0
  %492 = vmatprep.subr.mxu0 0.0
  %493 = vmatpush1.msra.mxu0 0.0
  %494 = vmatprep.subr.mxu0 0.0
  %495 = vmatpush1.msra.mxu0 0.0
  %496 = vmatprep.subr.mxu0 0.0
  %497 = vmatpush1.msra.mxu0 0.0
  %498 = vmatprep.subr.mxu0 0.0
  %499 = vmatpush1.msra.mxu0 0.0
  %500 = vmatprep.subr.mxu0 0.0
  %501 = vmatpush1.msra.mxu0 0.0
  %502 = vmatprep.subr.mxu0 0.0
  %503 = vmatpush1.msra.mxu0 0.0
  %504 = vmatprep.mubr.f32.mxu0 0.0
  %505 = vmatmul.mubr.f32.gmra.mrb[0].mxu0 %v393
  %v506 = vpop.f32.mrb[0].mxu0
  %v507 = vadd.f32 0.0, %v506
  %v508 = vpop.f32.mrb[0].mxu0
  %509 = vmatprep.mubr.f32.mxu0 0.0
  %510 = vmatmul.mubr.f32.gmra.mrb[0].mxu0 %v396
  %v511 = vpop.f32.mrb[0].mxu0
  %v512 = vadd.f32 0.0, %v511
  %v513 = vpop.f32.mrb[0].mxu0
  %514 = vmatprep.mubr.f32.mxu0 0.0
  %515 = vmatmul.mubr.f32.gmra.mrb[0].mxu0 %v399
  %v516 = vpop.f32.mrb[0].mxu0
  %v517 = vadd.f32 0.0, %v516
  %v518 = vpop.f32.mrb[0].mxu0
  %519 = vmatprep.mubr.f32.mxu0 0.0
  %520 = vmatmul.mubr.f32.gmra.mrb[0].mxu0 %v402
  %v521 = vpop.f32.mrb[0].mxu0
  %v522 = vadd.f32 0.0, %v521
  %v523 = vpop.f32.mrb[0].mxu0
  %524 = vmatprep.mubr.f32.mxu0 0.0
  %525 = vmatmul.mubr.f32.gmra.mrb[0].mxu0 %v405
  %v526 = vpop.f32.mrb[0].mxu0
  %v527 = vadd.f32 0.0, %v526
  %v528 = vpop.f32.mrb[0].mxu0
  %529 = vmatprep.mubr.f32.mxu0 0.0
  %530 = vmatmul.mubr.f32.gmra.mrb[0].mxu0 %v408
  %v531 = vpop.f32.mrb[0].mxu0
  %v532 = vadd.f32 0.0, %v531
  %v533 = vpop.f32.mrb[0].mxu0
  %534 = vmatprep.mubr.f32.mxu0 0.0
  %535 = vmatmul.mubr.f32.gmra.mrb[0].mxu0 %v411
  %v536 = vpop.f32.mrb[0].mxu0
  %v537 = vadd.f32 0.0, %v536
  %v538 = vpop.f32.mrb[0].mxu0
  %539 = vmatprep.mubr.f32.mxu0 0.0
  %540 = vmatmul.mubr.f32.gmra.mrb[0].mxu0 %v414
  %v541 = vpop.f32.mrb[0].mxu0
  %v542 = vadd.f32 0.0, %v541
  %v543 = vpop.f32.mrb[0].mxu0
  %544 = vmatprep.mubr.f32.mxu0 0.0
  %545 = vmatmul.mubr.f32.gmra.mrb[0].mxu0 %v417
  %v546 = vpop.f32.mrb[0].mxu0
  %v547 = vadd.f32 0.0, %v546
  %v548 = vpop.f32.mrb[0].mxu0
  %549 = vmatprep.mubr.f32.mxu0 0.0
  %550 = vmatmul.mubr.f32.gmra.mrb[0].mxu0 %v420
  %v551 = vpop.f32.mrb[0].mxu0
  %v552 = vadd.f32 0.0, %v551
  %v553 = vpop.f32.mrb[0].mxu0
  %554 = vmatprep.mubr.f32.mxu0 0.0
  %555 = vmatmul.mubr.f32.gmra.mrb[0].mxu0 %v423
  %v556 = vpop.f32.mrb[0].mxu0
  %v557 = vadd.f32 0.0, %v556
  %v558 = vpop.f32.mrb[0].mxu0
  %559 = vmatprep.mubr.f32.mxu0 0.0
  %560 = vmatmul.mubr.f32.gmra.mrb[0].mxu0 %v426
  %v561 = vpop.f32.mrb[0].mxu0
  %v562 = vadd.f32 0.0, %v561
  %v563 = vpop.f32.mrb[0].mxu0
  %564 = vmatprep.mubr.f32.mxu0 0.0
  %565 = vmatmul.mubr.f32.gmra.mrb[0].mxu0 %v429
  %v566 = vpop.f32.mrb[0].mxu0
  %v567 = vadd.f32 0.0, %v566
  %v568 = vpop.f32.mrb[0].mxu0
  %569 = vmatprep.mubr.f32.mxu0 0.0
  %570 = vmatmul.mubr.f32.gmra.mrb[0].mxu0 %v432
  %v571 = vpop.f32.mrb[0].mxu0
  %v572 = vadd.f32 0.0, %v571
  %v573 = vpop.f32.mrb[0].mxu0
  %574 = vmatprep.mubr.f32.mxu0 0.0
  %575 = vmatmul.mubr.f32.gmra.mrb[0].mxu0 %v435
  %v576 = vpop.f32.mrb[0].mxu0
  %v577 = vadd.f32 0.0, %v576
  %v578 = vpop.f32.mrb[0].mxu0
  %579 = vmatprep.mubr.f32.mxu0 0.0
  %580 = vmatmul.mubr.f32.gmra.mrb[0].mxu0 %v438
  %v581 = vpop.f32.mrb[0].mxu0
  %v582 = vadd.f32 0.0, %v581
  %v583 = vpop.f32.mrb[0].mxu0
  %584 = vdwg.mxu0
  %v586 = vsel %vm391, %v271, 0
  %v589 = vsel %vm391, %v276, 0
  %v592 = vsel %vm391, %v281, 0
  %v595 = vsel %vm391, %v286, 0
  %v598 = vsel %vm391, %v291, 0
  %v601 = vsel %vm391, %v296, 0
  %v604 = vsel %vm391, %v301, 0
  %v607 = vsel %vm391, %v306, 0
  %v610 = vsel %vm391, %v311, 0
  %v613 = vsel %vm391, %v316, 0
  %v616 = vsel %vm391, %v321, 0
  %v619 = vsel %vm391, %v326, 0
  %v622 = vsel %vm391, %v331, 0
  %v625 = vsel %vm391, %v336, 0
  %v628 = vsel %vm391, %v341, 0
  %v631 = vsel %vm391, %v346, 0
  %633 = vmatprep.subr.mxu0 0.0
  %634 = vmatpush1.msra.mxu0 %v349
  %635 = vmatprep.subr.mxu0 0.0
  %636 = vmatpush1.msra.mxu0 %v350
  %637 = vmatprep.subr.mxu0 0.0
  %638 = vmatpush1.msra.mxu0 %v351
  %639 = vmatprep.subr.mxu0 0.0
  %640 = vmatpush1.msra.mxu0 %v352
  %641 = vmatprep.subr.mxu0 0.0
  %642 = vmatpush1.msra.mxu0 0.0
  %643 = vmatprep.subr.mxu0 0.0
  %644 = vmatpush1.msra.mxu0 0.0
  %645 = vmatprep.subr.mxu0 0.0
  %646 = vmatpush1.msra.mxu0 0.0
  %647 = vmatprep.subr.mxu0 0.0
  %648 = vmatpush1.msra.mxu0 0.0
  %649 = vmatprep.subr.mxu0 0.0
  %650 = vmatpush1.msra.mxu0 0.0
  %651 = vmatprep.subr.mxu0 0.0
  %652 = vmatpush1.msra.mxu0 0.0
  %653 = vmatprep.subr.mxu0 0.0
  %654 = vmatpush1.msra.mxu0 0.0
  %655 = vmatprep.subr.mxu0 0.0
  %656 = vmatpush1.msra.mxu0 0.0
  %657 = vmatprep.subr.mxu0 0.0
  %658 = vmatpush1.msra.mxu0 0.0
  %659 = vmatprep.subr.mxu0 0.0
  %660 = vmatpush1.msra.mxu0 0.0
  %661 = vmatprep.subr.mxu0 0.0
  %662 = vmatpush1.msra.mxu0 0.0
  %663 = vmatprep.subr.mxu0 0.0
  %664 = vmatpush1.msra.mxu0 0.0
  %665 = vmatprep.subr.mxu0 0.0
  %666 = vmatpush1.msra.mxu0 0.0
  %667 = vmatprep.subr.mxu0 0.0
  %668 = vmatpush1.msra.mxu0 0.0
  %669 = vmatprep.subr.mxu0 0.0
  %670 = vmatpush1.msra.mxu0 0.0
  %671 = vmatprep.subr.mxu0 0.0
  %672 = vmatpush1.msra.mxu0 0.0
  %673 = vmatprep.subr.mxu0 0.0
  %674 = vmatpush1.msra.mxu0 0.0
  %675 = vmatprep.subr.mxu0 0.0
  %676 = vmatpush1.msra.mxu0 0.0
  %677 = vmatprep.subr.mxu0 0.0
  %678 = vmatpush1.msra.mxu0 0.0
  %679 = vmatprep.subr.mxu0 0.0
  %680 = vmatpush1.msra.mxu0 0.0
  %681 = vmatprep.subr.mxu0 0.0
  %682 = vmatpush1.msra.mxu0 0.0
  %683 = vmatprep.subr.mxu0 0.0
  %684 = vmatpush1.msra.mxu0 0.0
  %685 = vmatprep.subr.mxu0 0.0
  %686 = vmatpush1.msra.mxu0 0.0
  %687 = vmatprep.subr.mxu0 0.0
  %688 = vmatpush1.msra.mxu0 0.0
  %689 = vmatprep.subr.mxu0 0.0
  %690 = vmatpush1.msra.mxu0 0.0
  %691 = vmatprep.subr.mxu0 0.0
  %692 = vmatpush1.msra.mxu0 0.0
  %693 = vmatprep.subr.mxu0 0.0
  %694 = vmatpush1.msra.mxu0 0.0
  %695 = vmatprep.subr.mxu0 0.0
  %696 = vmatpush1.msra.mxu0 0.0
  %697 = vmatprep.mubr.f32.mxu0 0.0
  %698 = vmatmul.mubr.f32.gmra.mrb[0].mxu0 %v586
  %v699 = vpop.f32.mrb[0].mxu0
  %v700 = vadd.f32 %v507, %v699
  %v701 = vpop.f32.mrb[0].mxu0
  %702 = vmatprep.mubr.f32.mxu0 0.0
  %703 = vmatmul.mubr.f32.gmra.mrb[0].mxu0 %v589
  %v704 = vpop.f32.mrb[0].mxu0
  %v705 = vadd.f32 %v512, %v704
  %v706 = vpop.f32.mrb[0].mxu0
  %707 = vmatprep.mubr.f32.mxu0 0.0
  %708 = vmatmul.mubr.f32.gmra.mrb[0].mxu0 %v592
  %v709 = vpop.f32.mrb[0].mxu0
  %v710 = vadd.f32 %v517, %v709
  %v711 = vpop.f32.mrb[0].mxu0
  %712 = vmatprep.mubr.f32.mxu0 0.0
  %713 = vmatmul.mubr.f32.gmra.mrb[0].mxu0 %v595
  %v714 = vpop.f32.mrb[0].mxu0
  %v715 = vadd.f32 %v522, %v714
  %v716 = vpop.f32.mrb[0].mxu0
  %717 = vmatprep.mubr.f32.mxu0 0.0
  %718 = vmatmul.mubr.f32.gmra.mrb[0].mxu0 %v598
  %v719 = vpop.f32.mrb[0].mxu0
  %v720 = vadd.f32 %v527, %v719
  %v721 = vpop.f32.mrb[0].mxu0
  %722 = vmatprep.mubr.f32.mxu0 0.0
  %723 = vmatmul.mubr.f32.gmra.mrb[0].mxu0 %v601
  %v724 = vpop.f32.mrb[0].mxu0
  %v725 = vadd.f32 %v532, %v724
  %v726 = vpop.f32.mrb[0].mxu0
  %727 = vmatprep.mubr.f32.mxu0 0.0
  %728 = vmatmul.mubr.f32.gmra.mrb[0].mxu0 %v604
  %v729 = vpop.f32.mrb[0].mxu0
  %v730 = vadd.f32 %v537, %v729
  %v731 = vpop.f32.mrb[0].mxu0
  %732 = vmatprep.mubr.f32.mxu0 0.0
  %733 = vmatmul.mubr.f32.gmra.mrb[0].mxu0 %v607
  %v734 = vpop.f32.mrb[0].mxu0
  %v735 = vadd.f32 %v542, %v734
  %v736 = vpop.f32.mrb[0].mxu0
  %737 = vmatprep.mubr.f32.mxu0 0.0
  %738 = vmatmul.mubr.f32.gmra.mrb[0].mxu0 %v610
  %v739 = vpop.f32.mrb[0].mxu0
  %v740 = vadd.f32 %v547, %v739
  %v741 = vpop.f32.mrb[0].mxu0
  %742 = vmatprep.mubr.f32.mxu0 0.0
  %743 = vmatmul.mubr.f32.gmra.mrb[0].mxu0 %v613
  %v744 = vpop.f32.mrb[0].mxu0
  %v745 = vadd.f32 %v552, %v744
  %v746 = vpop.f32.mrb[0].mxu0
  %747 = vmatprep.mubr.f32.mxu0 0.0
  %748 = vmatmul.mubr.f32.gmra.mrb[0].mxu0 %v616
  %v749 = vpop.f32.mrb[0].mxu0
  %v750 = vadd.f32 %v557, %v749
  %v751 = vpop.f32.mrb[0].mxu0
  %752 = vmatprep.mubr.f32.mxu0 0.0
  %753 = vmatmul.mubr.f32.gmra.mrb[0].mxu0 %v619
  %v754 = vpop.f32.mrb[0].mxu0
  %v755 = vadd.f32 %v562, %v754
  %v756 = vpop.f32.mrb[0].mxu0
  %757 = vmatprep.mubr.f32.mxu0 0.0
  %758 = vmatmul.mubr.f32.gmra.mrb[0].mxu0 %v622
  %v759 = vpop.f32.mrb[0].mxu0
  %v760 = vadd.f32 %v567, %v759
  %v761 = vpop.f32.mrb[0].mxu0
  %762 = vmatprep.mubr.f32.mxu0 0.0
  %763 = vmatmul.mubr.f32.gmra.mrb[0].mxu0 %v625
  %v764 = vpop.f32.mrb[0].mxu0
  %v765 = vadd.f32 %v572, %v764
  %v766 = vpop.f32.mrb[0].mxu0
  %767 = vmatprep.mubr.f32.mxu0 0.0
  %768 = vmatmul.mubr.f32.gmra.mrb[0].mxu0 %v628
  %v769 = vpop.f32.mrb[0].mxu0
  %v770 = vadd.f32 %v577, %v769
  %v771 = vpop.f32.mrb[0].mxu0
  %772 = vmatprep.mubr.f32.mxu0 0.0
  %773 = vmatmul.mubr.f32.gmra.mrb[0].mxu0 %v631
  %v774 = vpop.f32.mrb[0].mxu0
  %v775 = vadd.f32 %v582, %v774
  %v776 = vpop.f32.mrb[0].mxu0
  %777 = vdwg.mxu0
  %v778 = vrot.slane %v271, 2
  %v779 = vrot.slane %v276, 2
  %v780 = vrot.slane %v281, 2
  %v781 = vrot.slane %v286, 2
  %v782 = vrot.slane %v291, 2
  %v783 = vrot.slane %v296, 2
  %v784 = vrot.slane %v301, 2
  %v785 = vrot.slane %v306, 2
  %v786 = vrot.slane %v311, 2
  %v787 = vrot.slane %v316, 2
  %v788 = vrot.slane %v321, 2
  %v789 = vrot.slane %v326, 2
  %v790 = vrot.slane %v331, 2
  %v791 = vrot.slane %v336, 2
  %v792 = vrot.slane %v341, 2
  %v793 = vrot.slane %v346, 2
  %vm794 = vcmp.lt.s32.totalorder %v26, 6
  %v795 = vsel %vm794, %v792, %v793
  %v796 = vsel %vm794, %v791, %v792
  %v797 = vsel %vm794, %v790, %v791
  %v798 = vsel %vm794, %v789, %v790
  %v799 = vsel %vm794, %v788, %v789
  %v800 = vsel %vm794, %v787, %v788
  %v801 = vsel %vm794, %v786, %v787
  %v802 = vsel %vm794, %v785, %v786
  %v803 = vsel %vm794, %v784, %v785
  %v804 = vsel %vm794, %v783, %v784
  %v805 = vsel %vm794, %v782, %v783
  %v806 = vsel %vm794, %v781, %v782
  %v807 = vsel %vm794, %v780, %v781
  %v808 = vsel %vm794, %v779, %v780
  %v809 = vsel %vm794, %v778, %v779
  %v810 = vsel %vm794, %v793, %v778
  %s811 = scalar_lea.vmem %s2, 64
  %v812 = vld [vmem:[%s811] sm:$0xff]
  %v813 = vld [vmem:[%s811 + $0x8] sm:$0xff]
  %v814 = vld [vmem:[%s811 + $0x10] sm:$0xff]
  %v815 = vld [vmem:[%s811 + $0x18] sm:$0xff]
  %v817 = vsel %vm391, %v809, 0
  %v820 = vsel %vm391, %v808, 0
  %v823 = vsel %vm391, %v807, 0
  %v826 = vsel %vm391, %v806, 0
  %v829 = vsel %vm391, %v805, 0
  %v832 = vsel %vm391, %v804, 0
  %v835 = vsel %vm391, %v803, 0
  %v838 = vsel %vm391, %v802, 0
  %v841 = vsel %vm391, %v801, 0
  %v844 = vsel %vm391, %v800, 0
  %v847 = vsel %vm391, %v799, 0
  %v850 = vsel %vm391, %v798, 0
  %v853 = vsel %vm391, %v797, 0
  %v856 = vsel %vm391, %v796, 0
  %v859 = vsel %vm391, %v795, 0
  %v862 = vsel %vm391, %v810, 0
  %864 = vmatprep.subr.mxu0 0.0
  %865 = vmatpush1.msra.mxu0 %v812
  %866 = vmatprep.subr.mxu0 0.0
  %867 = vmatpush1.msra.mxu0 %v813
  %868 = vmatprep.subr.mxu0 0.0
  %869 = vmatpush1.msra.mxu0 %v814
  %870 = vmatprep.subr.mxu0 0.0
  %871 = vmatpush1.msra.mxu0 %v815
  %872 = vmatprep.subr.mxu0 0.0
  %873 = vmatpush1.msra.mxu0 0.0
  %874 = vmatprep.subr.mxu0 0.0
  %875 = vmatpush1.msra.mxu0 0.0
  %876 = vmatprep.subr.mxu0 0.0
  %877 = vmatpush1.msra.mxu0 0.0
  %878 = vmatprep.subr.mxu0 0.0
  %879 = vmatpush1.msra.mxu0 0.0
  %880 = vmatprep.subr.mxu0 0.0
  %881 = vmatpush1.msra.mxu0 0.0
  %882 = vmatprep.subr.mxu0 0.0
  %883 = vmatpush1.msra.mxu0 0.0
  %884 = vmatprep.subr.mxu0 0.0
  %885 = vmatpush1.msra.mxu0 0.0
  %886 = vmatprep.subr.mxu0 0.0
  %887 = vmatpush1.msra.mxu0 0.0
  %888 = vmatprep.subr.mxu0 0.0
  %889 = vmatpush1.msra.mxu0 0.0
  %890 = vmatprep.subr.mxu0 0.0
  %891 = vmatpush1.msra.mxu0 0.0
  %892 = vmatprep.subr.mxu0 0.0
  %893 = vmatpush1.msra.mxu0 0.0
  %894 = vmatprep.subr.mxu0 0.0
  %895 = vmatpush1.msra.mxu0 0.0
  %896 = vmatprep.subr.mxu0 0.0
  %897 = vmatpush1.msra.mxu0 0.0
  %898 = vmatprep.subr.mxu0 0.0
  %899 = vmatpush1.msra.mxu0 0.0
  %900 = vmatprep.subr.mxu0 0.0
  %901 = vmatpush1.msra.mxu0 0.0
  %902 = vmatprep.subr.mxu0 0.0
  %903 = vmatpush1.msra.mxu0 0.0
  %904 = vmatprep.subr.mxu0 0.0
  %905 = vmatpush1.msra.mxu0 0.0
  %906 = vmatprep.subr.mxu0 0.0
  %907 = vmatpush1.msra.mxu0 0.0
  %908 = vmatprep.subr.mxu0 0.0
  %909 = vmatpush1.msra.mxu0 0.0
  %910 = vmatprep.subr.mxu0 0.0
  %911 = vmatpush1.msra.mxu0 0.0
  %912 = vmatprep.subr.mxu0 0.0
  %913 = vmatpush1.msra.mxu0 0.0
  %914 = vmatprep.subr.mxu0 0.0
  %915 = vmatpush1.msra.mxu0 0.0
  %916 = vmatprep.subr.mxu0 0.0
  %917 = vmatpush1.msra.mxu0 0.0
  %918 = vmatprep.subr.mxu0 0.0
  %919 = vmatpush1.msra.mxu0 0.0
  %920 = vmatprep.subr.mxu0 0.0
  %921 = vmatpush1.msra.mxu0 0.0
  %922 = vmatprep.subr.mxu0 0.0
  %923 = vmatpush1.msra.mxu0 0.0
  %924 = vmatprep.subr.mxu0 0.0
  %925 = vmatpush1.msra.mxu0 0.0
  %926 = vmatprep.subr.mxu0 0.0
  %927 = vmatpush1.msra.mxu0 0.0
  %928 = vmatprep.mubr.f32.mxu0 0.0
  %929 = vmatmul.mubr.f32.gmra.mrb[0].mxu0 %v817
  %v930 = vpop.f32.mrb[0].mxu0
  %v931 = vadd.f32 0.0, %v930
  %v932 = vpop.f32.mrb[0].mxu0
  %933 = vmatprep.mubr.f32.mxu0 0.0
  %934 = vmatmul.mubr.f32.gmra.mrb[0].mxu0 %v820
  %v935 = vpop.f32.mrb[0].mxu0
  %v936 = vadd.f32 0.0, %v935
  %v937 = vpop.f32.mrb[0].mxu0
  %938 = vmatprep.mubr.f32.mxu0 0.0
  %939 = vmatmul.mubr.f32.gmra.mrb[0].mxu0 %v823
  %v940 = vpop.f32.mrb[0].mxu0
  %v941 = vadd.f32 0.0, %v940
  %v942 = vpop.f32.mrb[0].mxu0
  %943 = vmatprep.mubr.f32.mxu0 0.0
  %944 = vmatmul.mubr.f32.gmra.mrb[0].mxu0 %v826
  %v945 = vpop.f32.mrb[0].mxu0
  %v946 = vadd.f32 0.0, %v945
  %v947 = vpop.f32.mrb[0].mxu0
  %948 = vmatprep.mubr.f32.mxu0 0.0
  %949 = vmatmul.mubr.f32.gmra.mrb[0].mxu0 %v829
  %v950 = vpop.f32.mrb[0].mxu0
  %v951 = vadd.f32 0.0, %v950
  %v952 = vpop.f32.mrb[0].mxu0
  %953 = vmatprep.mubr.f32.mxu0 0.0
  %954 = vmatmul.mubr.f32.gmra.mrb[0].mxu0 %v832
  %v955 = vpop.f32.mrb[0].mxu0
  %v956 = vadd.f32 0.0, %v955
  %v957 = vpop.f32.mrb[0].mxu0
  %958 = vmatprep.mubr.f32.mxu0 0.0
  %959 = vmatmul.mubr.f32.gmra.mrb[0].mxu0 %v835
  %v960 = vpop.f32.mrb[0].mxu0
  %v961 = vadd.f32 0.0, %v960
  %v962 = vpop.f32.mrb[0].mxu0
  %963 = vmatprep.mubr.f32.mxu0 0.0
  %964 = vmatmul.mubr.f32.gmra.mrb[0].mxu0 %v838
  %v965 = vpop.f32.mrb[0].mxu0
  %v966 = vadd.f32 0.0, %v965
  %v967 = vpop.f32.mrb[0].mxu0
  %968 = vmatprep.mubr.f32.mxu0 0.0
  %969 = vmatmul.mubr.f32.gmra.mrb[0].mxu0 %v841
  %v970 = vpop.f32.mrb[0].mxu0
  %v971 = vadd.f32 0.0, %v970
  %v972 = vpop.f32.mrb[0].mxu0
  %973 = vmatprep.mubr.f32.mxu0 0.0
  %974 = vmatmul.mubr.f32.gmra.mrb[0].mxu0 %v844
  %v975 = vpop.f32.mrb[0].mxu0
  %v976 = vadd.f32 0.0, %v975
  %v977 = vpop.f32.mrb[0].mxu0
  %978 = vmatprep.mubr.f32.mxu0 0.0
  %979 = vmatmul.mubr.f32.gmra.mrb[0].mxu0 %v847
  %v980 = vpop.f32.mrb[0].mxu0
  %v981 = vadd.f32 0.0, %v980
  %v982 = vpop.f32.mrb[0].mxu0
  %983 = vmatprep.mubr.f32.mxu0 0.0
  %984 = vmatmul.mubr.f32.gmra.mrb[0].mxu0 %v850
  %v985 = vpop.f32.mrb[0].mxu0
  %v986 = vadd.f32 0.0, %v985
  %v987 = vpop.f32.mrb[0].mxu0
  %988 = vmatprep.mubr.f32.mxu0 0.0
  %989 = vmatmul.mubr.f32.gmra.mrb[0].mxu0 %v853
  %v990 = vpop.f32.mrb[0].mxu0
  %v991 = vadd.f32 0.0, %v990
  %v992 = vpop.f32.mrb[0].mxu0
  %993 = vmatprep.mubr.f32.mxu0 0.0
  %994 = vmatmul.mubr.f32.gmra.mrb[0].mxu0 %v856
  %v995 = vpop.f32.mrb[0].mxu0
  %v996 = vadd.f32 0.0, %v995
  %v997 = vpop.f32.mrb[0].mxu0
  %998 = vmatprep.mubr.f32.mxu0 0.0
  %999 = vmatmul.mubr.f32.gmra.mrb[0].mxu0 %v859
  %v1000 = vpop.f32.mrb[0].mxu0
  %v1001 = vadd.f32 0.0, %v1000
  %v1002 = vpop.f32.mrb[0].mxu0
  %1003 = vmatprep.mubr.f32.mxu0 0.0
  %1004 = vmatmul.mubr.f32.gmra.mrb[0].mxu0 %v862
  %v1005 = vpop.f32.mrb[0].mxu0
  %v1006 = vadd.f32 0.0, %v1005
  %v1007 = vpop.f32.mrb[0].mxu0
  %1008 = vdwg.mxu0
  %v1009 = vadd.f32 %v700, %v931
  %v1010 = vadd.f32 %v705, %v936
  %v1011 = vadd.f32 %v710, %v941
  %v1012 = vadd.f32 %v715, %v946
  %v1013 = vadd.f32 %v720, %v951
  %v1014 = vadd.f32 %v725, %v956
  %v1015 = vadd.f32 %v730, %v961
  %v1016 = vadd.f32 %v735, %v966
  %v1017 = vadd.f32 %v740, %v971
  %v1018 = vadd.f32 %v745, %v976
  %v1019 = vadd.f32 %v750, %v981
  %v1020 = vadd.f32 %v755, %v986
  %v1021 = vadd.f32 %v760, %v991
  %v1022 = vadd.f32 %v765, %v996
  %v1023 = vadd.f32 %v770, %v1001
  %v1024 = vadd.f32 %v775, %v1006
  %v1025 = vld [vmem:[%s3] sm:$0x1]
  %v1027 = vlaneseq
  %v1028 = vshrl.u32 %v1027, 7
  %v1029 = vsub.s32 0, %v1028
  %v1030 = vrot.slane %v1025, %v1029
  %v1032 = vadd.f32 %v1009, %v1030
  %v1033 = vadd.f32 %v1010, %v1030
  %v1034 = vadd.f32 %v1011, %v1030
  %v1035 = vadd.f32 %v1012, %v1030
  %v1036 = vadd.f32 %v1013, %v1030
  %v1037 = vadd.f32 %v1014, %v1030
  %v1038 = vadd.f32 %v1015, %v1030
  %v1039 = vadd.f32 %v1016, %v1030
  %v1040 = vadd.f32 %v1017, %v1030
  %v1041 = vadd.f32 %v1018, %v1030
  %v1042 = vadd.f32 %v1019, %v1030
  %v1043 = vadd.f32 %v1020, %v1030
  %v1044 = vadd.f32 %v1021, %v1030
  %v1045 = vadd.f32 %v1022, %v1030
  %v1046 = vadd.f32 %v1023, %v1030
  %v1047 = vadd.f32 %v1024, %v1030
  %v1048 = vmax.f32 %v1032, 0.0
  %v1049 = vmax.f32 %v1033, 0.0
  %v1050 = vmax.f32 %v1034, 0.0
  %v1051 = vmax.f32 %v1035, 0.0
  %v1052 = vmax.f32 %v1036, 0.0
  %v1053 = vmax.f32 %v1037, 0.0
  %v1054 = vmax.f32 %v1038, 0.0
  %v1055 = vmax.f32 %v1039, 0.0
  %v1056 = vmax.f32 %v1040, 0.0
  %v1057 = vmax.f32 %v1041, 0.0
  %v1058 = vmax.f32 %v1042, 0.0
  %v1059 = vmax.f32 %v1043, 0.0
  %v1060 = vmax.f32 %v1044, 0.0
  %v1061 = vmax.f32 %v1045, 0.0
  %v1062 = vmax.f32 %v1046, 0.0
  %v1063 = vmax.f32 %v1047, 0.0
  %v1064 = vsel %vm34, %v1048, -inf
  %v1065 = vsel %vm35, %v1049, -inf
  %v1066 = vsel %vm36, %v1050, -inf
  %v1067 = vsel %vm37, %v1051, -inf
  %v1068 = vsel %vm38, %v1052, -inf
  %v1069 = vsel %vm39, %v1053, -inf
  %v1070 = vsel %vm40, %v1054, -inf
  %v1071 = vsel %vm41, %v1055, -inf
  %v1072 = vsel %vm34, %v1056, -inf
  %v1073 = vsel %vm35, %v1057, -inf
  %v1074 = vsel %vm36, %v1058, -inf
  %v1075 = vsel %vm37, %v1059, -inf
  %v1076 = vsel %vm38, %v1060, -inf
  %v1077 = vsel %vm39, %v1061, -inf
  %v1078 = vsel %vm40, %v1062, -inf
  %v1079 = vsel %vm41, %v1063, -inf
  %v1080 = vsel %vm391, %v1064, -inf
  %v1081 = vsel %vm391, %v1065, -inf
  %v1082 = vsel %vm391, %v1066, -inf
  %v1083 = vmax.f32 %v1080, %v1082
  %v1084 = vsel %vm391, %v1067, -inf
  %v1085 = vmax.f32 %v1081, %v1084
  %v1086 = vsel %vm391, %v1068, -inf
  %v1087 = vmax.f32 %v1083, %v1086
  %v1088 = vsel %vm391, %v1069, -inf
  %v1089 = vmax.f32 %v1085, %v1088
  %v1090 = vsel %vm391, %v1070, -inf
  %v1091 = vmax.f32 %v1087, %v1090
  %v1092 = vsel %vm391, %v1071, -inf
  %v1093 = vmax.f32 %v1089, %v1092
  %v1094 = vmax.f32 %v1091, %v1093
  %v1095 = vrot.slane %v1094, 4
  %v1096 = vmax.f32 %v1094, %v1095
  %v1097 = vrot.slane %v1096, 2
  %v1098 = vmax.f32 %v1096, %v1097
  %v1099 = vrot.slane %v1098, 1
  %v1100 = vmax.f32 %v1098, %v1099
  %v1101 = vsel %vm391, %v1072, -inf
  %v1102 = vsel %vm391, %v1073, -inf
  %v1103 = vsel %vm391, %v1074, -inf
  %v1104 = vmax.f32 %v1101, %v1103
  %v1105 = vsel %vm391, %v1075, -inf
  %v1106 = vmax.f32 %v1102, %v1105
  %v1107 = vsel %vm391, %v1076, -inf
  %v1108 = vmax.f32 %v1104, %v1107
  %v1109 = vsel %vm391, %v1077, -inf
  %v1110 = vmax.f32 %v1106, %v1109
  %v1111 = vsel %vm391, %v1078, -inf
  %v1112 = vmax.f32 %v1108, %v1111
  %v1113 = vsel %vm391, %v1079, -inf
  %v1114 = vmax.f32 %v1110, %v1113
  %v1115 = vmax.f32 %v1112, %v1114
  %v1116 = vrot.slane %v1115, 4
  %v1117 = vmax.f32 %v1115, %v1116
  %v1118 = vrot.slane %v1117, 2
  %v1119 = vmax.f32 %v1117, %v1118
  %v1120 = vrot.slane %v1119, 1
  %v1121 = vmax.f32 %v1119, %v1120
  %v1122 = vld [vmem:[%s4] sm:$0xff]
  %v1123 = vld [vmem:[%s4 + $0x8] sm:$0xff]
  %v1124 = vld [vmem:[%s4 + $0x10] sm:$0xff]
  %v1125 = vld [vmem:[%s4 + $0x18] sm:$0xff]
  %v1126 = vld [vmem:[%s5] sm:$0x1]
  %v1128 = vlaneseq
  %v1129 = vshrl.u32 %v1128, 7
  %v1130 = vsub.s32 0, %v1129
  %v1131 = vrot.slane %v1126, %v1130
  %vm1135 = vcmask 1041409
  %v1136 = vsel %vm1135, %v1121, %v1100
  %v1137 = vsel %vm391, %v1136, 0
  %1139 = vmatprep.subr.mxu0 0.0
  %1140 = vmatpush1.msra.mxu0 %v1122
  %1141 = vmatprep.subr.mxu0 0.0
  %1142 = vmatpush1.msra.mxu0 %v1123
  %1143 = vmatprep.subr.mxu0 0.0
  %1144 = vmatpush1.msra.mxu0 %v1124
  %1145 = vmatprep.subr.mxu0 0.0
  %1146 = vmatpush1.msra.mxu0 %v1125
  %1147 = vmatprep.subr.mxu0 0.0
  %1148 = vmatpush1.msra.mxu0 0.0
  %1149 = vmatprep.subr.mxu0 0.0
  %1150 = vmatpush1.msra.mxu0 0.0
  %1151 = vmatprep.subr.mxu0 0.0
  %1152 = vmatpush1.msra.mxu0 0.0
  %1153 = vmatprep.subr.mxu0 0.0
  %1154 = vmatpush1.msra.mxu0 0.0
  %1155 = vmatprep.subr.mxu0 0.0
  %1156 = vmatpush1.msra.mxu0 0.0
  %1157 = vmatprep.subr.mxu0 0.0
  %1158 = vmatpush1.msra.mxu0 0.0
  %1159 = vmatprep.subr.mxu0 0.0
  %1160 = vmatpush1.msra.mxu0 0.0
  %1161 = vmatprep.subr.mxu0 0.0
  %1162 = vmatpush1.msra.mxu0 0.0
  %1163 = vmatprep.subr.mxu0 0.0
  %1164 = vmatpush1.msra.mxu0 0.0
  %1165 = vmatprep.subr.mxu0 0.0
  %1166 = vmatpush1.msra.mxu0 0.0
  %1167 = vmatprep.subr.mxu0 0.0
  %1168 = vmatpush1.msra.mxu0 0.0
  %1169 = vmatprep.subr.mxu0 0.0
  %1170 = vmatpush1.msra.mxu0 0.0
  %1171 = vmatprep.subr.mxu0 0.0
  %1172 = vmatpush1.msra.mxu0 0.0
  %1173 = vmatprep.subr.mxu0 0.0
  %1174 = vmatpush1.msra.mxu0 0.0
  %1175 = vmatprep.subr.mxu0 0.0
  %1176 = vmatpush1.msra.mxu0 0.0
  %1177 = vmatprep.subr.mxu0 0.0
  %1178 = vmatpush1.msra.mxu0 0.0
  %1179 = vmatprep.subr.mxu0 0.0
  %1180 = vmatpush1.msra.mxu0 0.0
  %1181 = vmatprep.subr.mxu0 0.0
  %1182 = vmatpush1.msra.mxu0 0.0
  %1183 = vmatprep.subr.mxu0 0.0
  %1184 = vmatpush1.msra.mxu0 0.0
  %1185 = vmatprep.subr.mxu0 0.0
  %1186 = vmatpush1.msra.mxu0 0.0
  %1187 = vmatprep.subr.mxu0 0.0
  %1188 = vmatpush1.msra.mxu0 0.0
  %1189 = vmatprep.subr.mxu0 0.0
  %1190 = vmatpush1.msra.mxu0 0.0
  %1191 = vmatprep.subr.mxu0 0.0
  %1192 = vmatpush1.msra.mxu0 0.0
  %1193 = vmatprep.subr.mxu0 0.0
  %1194 = vmatpush1.msra.mxu0 0.0
  %1195 = vmatprep.subr.mxu0 0.0
  %1196 = vmatpush1.msra.mxu0 0.0
  %1197 = vmatprep.subr.mxu0 0.0
  %1198 = vmatpush1.msra.mxu0 0.0
  %1199 = vmatprep.subr.mxu0 0.0
  %1200 = vmatpush1.msra.mxu0 0.0
  %1201 = vmatprep.subr.mxu0 0.0
  %1202 = vmatpush1.msra.mxu0 0.0
  %1203 = vmatprep.mubr.f32.mxu0 0.0
  %1204 = vmatmul.mubr.f32.gmra.mrb[0].mxu0 %v1137
  %v1205 = vpop.f32.mrb[0].mxu0
  %v1206 = vadd.f32 %v1131, %v1205
  %v1207 = vpop.f32.mrb[0].mxu0
  %1208 = vdwg.mxu0
  %vm1209 = vcmask 254976
  %1210 = vst.msk [vmem:[%s6] sm:$0x3] %vm1209, %v1206
  %s1211 = scalar_lea.vmem %s0, 128
  %v1212 = vld [vmem:[%s1211] sm:$0xff]
  %v1213 = vld [vmem:[%s1211 + $0x8] sm:$0xff]
  %v1214 = vld [vmem:[%s1211 + $0x10] sm:$0xff]
  %v1215 = vld [vmem:[%s1211 + $0x18] sm:$0xff]
  %v1216 = vld [vmem:[%s1211 + $0x20] sm:$0xff]
  %v1217 = vld [vmem:[%s1211 + $0x28] sm:$0xff]
  %v1218 = vld [vmem:[%s1211 + $0x30] sm:$0xff]
  %v1219 = vld [vmem:[%s1211 + $0x38] sm:$0xff]
  %v1220 = vld [vmem:[%s1211 + $0x40] sm:$0xff]
  %v1221 = vld [vmem:[%s1211 + $0x48] sm:$0xff]
  %v1222 = vld [vmem:[%s1211 + $0x50] sm:$0xff]
  %v1223 = vld [vmem:[%s1211 + $0x58] sm:$0xff]
  %v1224 = vld [vmem:[%s1211 + $0x60] sm:$0xff]
  %v1225 = vld [vmem:[%s1211 + $0x68] sm:$0xff]
  %v1226 = vld [vmem:[%s1211 + $0x70] sm:$0xff]
  %v1227 = vld [vmem:[%s1211 + $0x78] sm:$0xff]
  %1228 = vset.pattern.permute.xlu0 0
  %1229 = vperm.xlu0 %1228, %v1212
  %v1230 = vpop.permute.xlu0 %1229
  %1231 = vset.pattern.permute.xlu0 0
  %1232 = vperm.xlu0 %1231, %v1213
  %v1233 = vpop.permute.xlu0 %1232
  %1234 = vset.pattern.permute.xlu0 0
  %1235 = vperm.xlu0 %1234, %v1214
  %v1236 = vpop.permute.xlu0 %1235
  %1237 = vset.pattern.permute.xlu0 0
  %1238 = vperm.xlu0 %1237, %v1215
  %v1239 = vpop.permute.xlu0 %1238
  %1240 = vset.pattern.permute.xlu0 0
  %1241 = vperm.xlu0 %1240, %v1216
  %v1242 = vpop.permute.xlu0 %1241
  %1243 = vset.pattern.permute.xlu0 0
  %1244 = vperm.xlu0 %1243, %v1217
  %v1245 = vpop.permute.xlu0 %1244
  %1246 = vset.pattern.permute.xlu0 0
  %1247 = vperm.xlu0 %1246, %v1218
  %v1248 = vpop.permute.xlu0 %1247
  %1249 = vset.pattern.permute.xlu0 0
  %1250 = vperm.xlu0 %1249, %v1219
  %v1251 = vpop.permute.xlu0 %1250
  %1252 = vset.pattern.permute.xlu0 0
  %1253 = vperm.xlu0 %1252, %v1220
  %v1254 = vpop.permute.xlu0 %1253
  %1255 = vset.pattern.permute.xlu0 0
  %1256 = vperm.xlu0 %1255, %v1221
  %v1257 = vpop.permute.xlu0 %1256
  %1258 = vset.pattern.permute.xlu0 0
  %1259 = vperm.xlu0 %1258, %v1222
  %v1260 = vpop.permute.xlu0 %1259
  %1261 = vset.pattern.permute.xlu0 0
  %1262 = vperm.xlu0 %1261, %v1223
  %v1263 = vpop.permute.xlu0 %1262
  %1264 = vset.pattern.permute.xlu0 0
  %1265 = vperm.xlu0 %1264, %v1224
  %v1266 = vpop.permute.xlu0 %1265
  %1267 = vset.pattern.permute.xlu0 0
  %1268 = vperm.xlu0 %1267, %v1225
  %v1269 = vpop.permute.xlu0 %1268
  %1270 = vset.pattern.permute.xlu0 0
  %1271 = vperm.xlu0 %1270, %v1226
  %v1272 = vpop.permute.xlu0 %1271
  %1273 = vset.pattern.permute.xlu0 0
  %1274 = vperm.xlu0 %1273, %v1227
  %v1275 = vpop.permute.xlu0 %1274
  %vm1276 = vcmp.eq.s32.totalorder %v24, %v1230
  %vm1277 = vcmp.eq.s32.totalorder %v24, %v1233
  %vm1278 = vcmp.eq.s32.totalorder %v24, %v1236
  %vm1279 = vcmp.eq.s32.totalorder %v24, %v1239
  %vm1280 = vcmp.eq.s32.totalorder %v24, %v1242
  %vm1281 = vcmp.eq.s32.totalorder %v24, %v1245
  %vm1282 = vcmp.eq.s32.totalorder %v24, %v1248
  %vm1283 = vcmp.eq.s32.totalorder %v24, %v1251
  %vm1284 = vcmp.eq.s32.totalorder %v24, %v1254
  %vm1285 = vcmp.eq.s32.totalorder %v24, %v1257
  %vm1286 = vcmp.eq.s32.totalorder %v24, %v1260
  %vm1287 = vcmp.eq.s32.totalorder %v24, %v1263
  %vm1288 = vcmp.eq.s32.totalorder %v24, %v1266
  %vm1289 = vcmp.eq.s32.totalorder %v24, %v1269
  %vm1290 = vcmp.eq.s32.totalorder %v24, %v1272
  %vm1291 = vcmp.eq.s32.totalorder %v24, %v1275
  %v1292 = vsel %vm1276, 1.0, 0.0
  %v1293 = vsel %vm1277, 1.0, 0.0
  %v1294 = vsel %vm1278, 1.0, 0.0
  %v1295 = vsel %vm1279, 1.0, 0.0
  %v1296 = vsel %vm1280, 1.0, 0.0
  %v1297 = vsel %vm1281, 1.0, 0.0
  %v1298 = vsel %vm1282, 1.0, 0.0
  %v1299 = vsel %vm1283, 1.0, 0.0
  %v1300 = vsel %vm1284, 1.0, 0.0
  %v1301 = vsel %vm1285, 1.0, 0.0
  %v1302 = vsel %vm1286, 1.0, 0.0
  %v1303 = vsel %vm1287, 1.0, 0.0
  %v1304 = vsel %vm1288, 1.0, 0.0
  %v1305 = vsel %vm1289, 1.0, 0.0
  %v1306 = vsel %vm1290, 1.0, 0.0
  %v1307 = vsel %vm1291, 1.0, 0.0
  %s1308 = scalar_lea.vmem %s1, 104
  %v1309 = vld [vmem:[%s1308] sm:$0xff]
  %v1310 = vld [vmem:[%s1308 + $0x8] sm:$0xff]
  %v1311 = vld [vmem:[%s1308 + $0x10] sm:$0xff]
  %v1312 = vld [vmem:[%s1308 + $0x18] sm:$0xff]
  %v1313 = vld [vmem:[%s1308 + $0x20] sm:$0xff]
  %v1314 = vld [vmem:[%s1308 + $0x28] sm:$0xff]
  %v1315 = vld [vmem:[%s1308 + $0x30] sm:$0xff]
  %v1316 = vld [vmem:[%s1308 + $0x38] sm:$0xff]
  %v1317 = vld [vmem:[%s1308 + $0x40] sm:$0xff]
  %v1318 = vld [vmem:[%s1308 + $0x48] sm:$0xff]
  %v1319 = vld [vmem:[%s1308 + $0x50] sm:$0xff]
  %v1320 = vld [vmem:[%s1308 + $0x58] sm:$0xff]
  %v1321 = vld [vmem:[%s1308 + $0x60] sm:$0xf]
  %v1323 = vsel %vm151, %v1292, 0
  %v1326 = vsel %vm151, %v1293, 0
  %v1329 = vsel %vm151, %v1294, 0
  %v1332 = vsel %vm151, %v1295, 0
  %v1335 = vsel %vm151, %v1296, 0
  %v1338 = vsel %vm151, %v1297, 0
  %v1341 = vsel %vm151, %v1298, 0
  %v1344 = vsel %vm151, %v1299, 0
  %v1347 = vsel %vm151, %v1300, 0
  %v1350 = vsel %vm151, %v1301, 0
  %v1353 = vsel %vm151, %v1302, 0
  %v1356 = vsel %vm151, %v1303, 0
  %v1359 = vsel %vm151, %v1304, 0
  %v1362 = vsel %vm151, %v1305, 0
  %v1365 = vsel %vm151, %v1306, 0
  %v1368 = vsel %vm151, %v1307, 0
  %v1371 = vsel %vm200, %v1321, 0
  %1373 = vmatprep.subr.mxu0 0.0
  %1374 = vmatpush1.msra.mxu0 %v1309
  %1375 = vmatprep.subr.mxu0 0.0
  %1376 = vmatpush1.msra.mxu0 %v1310
  %1377 = vmatprep.subr.mxu0 0.0
  %1378 = vmatpush1.msra.mxu0 %v1311
  %1379 = vmatprep.subr.mxu0 0.0
  %1380 = vmatpush1.msra.mxu0 %v1312
  %1381 = vmatprep.subr.mxu0 0.0
  %1382 = vmatpush1.msra.mxu0 %v1313
  %1383 = vmatprep.subr.mxu0 0.0
  %1384 = vmatpush1.msra.mxu0 %v1314
  %1385 = vmatprep.subr.mxu0 0.0
  %1386 = vmatpush1.msra.mxu0 %v1315
  %1387 = vmatprep.subr.mxu0 0.0
  %1388 = vmatpush1.msra.mxu0 %v1316
  %1389 = vmatprep.subr.mxu0 0.0
  %1390 = vmatpush1.msra.mxu0 %v1317
  %1391 = vmatprep.subr.mxu0 0.0
  %1392 = vmatpush1.msra.mxu0 %v1318
  %1393 = vmatprep.subr.mxu0 0.0
  %1394 = vmatpush1.msra.mxu0 %v1319
  %1395 = vmatprep.subr.mxu0 0.0
  %1396 = vmatpush1.msra.mxu0 %v1320
  %1397 = vmatprep.subr.mxu0 0.0
  %1398 = vmatpush1.msra.mxu0 %v1371
  %1399 = vmatprep.subr.mxu0 0.0
  %1400 = vmatpush1.msra.mxu0 0.0
  %1401 = vmatprep.subr.mxu0 0.0
  %1402 = vmatpush1.msra.mxu0 0.0
  %1403 = vmatprep.subr.mxu0 0.0
  %1404 = vmatpush1.msra.mxu0 0.0
  %1405 = vmatprep.subr.mxu0 0.0
  %1406 = vmatpush1.msra.mxu0 0.0
  %1407 = vmatprep.subr.mxu0 0.0
  %1408 = vmatpush1.msra.mxu0 0.0
  %1409 = vmatprep.subr.mxu0 0.0
  %1410 = vmatpush1.msra.mxu0 0.0
  %1411 = vmatprep.subr.mxu0 0.0
  %1412 = vmatpush1.msra.mxu0 0.0
  %1413 = vmatprep.subr.mxu0 0.0
  %1414 = vmatpush1.msra.mxu0 0.0
  %1415 = vmatprep.subr.mxu0 0.0
  %1416 = vmatpush1.msra.mxu0 0.0
  %1417 = vmatprep.subr.mxu0 0.0
  %1418 = vmatpush1.msra.mxu0 0.0
  %1419 = vmatprep.subr.mxu0 0.0
  %1420 = vmatpush1.msra.mxu0 0.0
  %1421 = vmatprep.subr.mxu0 0.0
  %1422 = vmatpush1.msra.mxu0 0.0
  %1423 = vmatprep.subr.mxu0 0.0
  %1424 = vmatpush1.msra.mxu0 0.0
  %1425 = vmatprep.subr.mxu0 0.0
  %1426 = vmatpush1.msra.mxu0 0.0
  %1427 = vmatprep.subr.mxu0 0.0
  %1428 = vmatpush1.msra.mxu0 0.0
  %1429 = vmatprep.subr.mxu0 0.0
  %1430 = vmatpush1.msra.mxu0 0.0
  %1431 = vmatprep.subr.mxu0 0.0
  %1432 = vmatpush1.msra.mxu0 0.0
  %1433 = vmatprep.subr.mxu0 0.0
  %1434 = vmatpush1.msra.mxu0 0.0
  %1435 = vmatprep.subr.mxu0 0.0
  %1436 = vmatpush1.msra.mxu0 0.0
  %1437 = vmatprep.mubr.f32.mxu0 0.0
  %1438 = vmatmul.mubr.f32.gmra.mrb[0].mxu0 %v1323
  %v1439 = vpop.f32.mrb[0].mxu0
  %v1440 = vadd.f32 0.0, %v1439
  %v1441 = vpop.f32.mrb[0].mxu0
  %1442 = vmatprep.mubr.f32.mxu0 0.0
  %1443 = vmatmul.mubr.f32.gmra.mrb[0].mxu0 %v1326
  %v1444 = vpop.f32.mrb[0].mxu0
  %v1445 = vadd.f32 0.0, %v1444
  %v1446 = vpop.f32.mrb[0].mxu0
  %1447 = vmatprep.mubr.f32.mxu0 0.0
  %1448 = vmatmul.mubr.f32.gmra.mrb[0].mxu0 %v1329
  %v1449 = vpop.f32.mrb[0].mxu0
  %v1450 = vadd.f32 0.0, %v1449
  %v1451 = vpop.f32.mrb[0].mxu0
  %1452 = vmatprep.mubr.f32.mxu0 0.0
  %1453 = vmatmul.mubr.f32.gmra.mrb[0].mxu0 %v1332
  %v1454 = vpop.f32.mrb[0].mxu0
  %v1455 = vadd.f32 0.0, %v1454
  %v1456 = vpop.f32.mrb[0].mxu0
  %1457 = vmatprep.mubr.f32.mxu0 0.0
  %1458 = vmatmul.mubr.f32.gmra.mrb[0].mxu0 %v1335
  %v1459 = vpop.f32.mrb[0].mxu0
  %v1460 = vadd.f32 0.0, %v1459
  %v1461 = vpop.f32.mrb[0].mxu0
  %1462 = vmatprep.mubr.f32.mxu0 0.0
  %1463 = vmatmul.mubr.f32.gmra.mrb[0].mxu0 %v1338
  %v1464 = vpop.f32.mrb[0].mxu0
  %v1465 = vadd.f32 0.0, %v1464
  %v1466 = vpop.f32.mrb[0].mxu0
  %1467 = vmatprep.mubr.f32.mxu0 0.0
  %1468 = vmatmul.mubr.f32.gmra.mrb[0].mxu0 %v1341
  %v1469 = vpop.f32.mrb[0].mxu0
  %v1470 = vadd.f32 0.0, %v1469
  %v1471 = vpop.f32.mrb[0].mxu0
  %1472 = vmatprep.mubr.f32.mxu0 0.0
  %1473 = vmatmul.mubr.f32.gmra.mrb[0].mxu0 %v1344
  %v1474 = vpop.f32.mrb[0].mxu0
  %v1475 = vadd.f32 0.0, %v1474
  %v1476 = vpop.f32.mrb[0].mxu0
  %1477 = vmatprep.mubr.f32.mxu0 0.0
  %1478 = vmatmul.mubr.f32.gmra.mrb[0].mxu0 %v1347
  %v1479 = vpop.f32.mrb[0].mxu0
  %v1480 = vadd.f32 0.0, %v1479
  %v1481 = vpop.f32.mrb[0].mxu0
  %1482 = vmatprep.mubr.f32.mxu0 0.0
  %1483 = vmatmul.mubr.f32.gmra.mrb[0].mxu0 %v1350
  %v1484 = vpop.f32.mrb[0].mxu0
  %v1485 = vadd.f32 0.0, %v1484
  %v1486 = vpop.f32.mrb[0].mxu0
  %1487 = vmatprep.mubr.f32.mxu0 0.0
  %1488 = vmatmul.mubr.f32.gmra.mrb[0].mxu0 %v1353
  %v1489 = vpop.f32.mrb[0].mxu0
  %v1490 = vadd.f32 0.0, %v1489
  %v1491 = vpop.f32.mrb[0].mxu0
  %1492 = vmatprep.mubr.f32.mxu0 0.0
  %1493 = vmatmul.mubr.f32.gmra.mrb[0].mxu0 %v1356
  %v1494 = vpop.f32.mrb[0].mxu0
  %v1495 = vadd.f32 0.0, %v1494
  %v1496 = vpop.f32.mrb[0].mxu0
  %1497 = vmatprep.mubr.f32.mxu0 0.0
  %1498 = vmatmul.mubr.f32.gmra.mrb[0].mxu0 %v1359
  %v1499 = vpop.f32.mrb[0].mxu0
  %v1500 = vadd.f32 0.0, %v1499
  %v1501 = vpop.f32.mrb[0].mxu0
  %1502 = vmatprep.mubr.f32.mxu0 0.0
  %1503 = vmatmul.mubr.f32.gmra.mrb[0].mxu0 %v1362
  %v1504 = vpop.f32.mrb[0].mxu0
  %v1505 = vadd.f32 0.0, %v1504
  %v1506 = vpop.f32.mrb[0].mxu0
  %1507 = vmatprep.mubr.f32.mxu0 0.0
  %1508 = vmatmul.mubr.f32.gmra.mrb[0].mxu0 %v1365
  %v1509 = vpop.f32.mrb[0].mxu0
  %v1510 = vadd.f32 0.0, %v1509
  %v1511 = vpop.f32.mrb[0].mxu0
  %1512 = vmatprep.mubr.f32.mxu0 0.0
  %1513 = vmatmul.mubr.f32.gmra.mrb[0].mxu0 %v1368
  %v1514 = vpop.f32.mrb[0].mxu0
  %v1515 = vadd.f32 0.0, %v1514
  %v1516 = vpop.f32.mrb[0].mxu0
  %1517 = vdwg.mxu0
  %s1518 = scalar_lea.vmem %s2, 96
  %v1519 = vld [vmem:[%s1518] sm:$0xff]
  %v1520 = vld [vmem:[%s1518 + $0x8] sm:$0xff]
  %v1521 = vld [vmem:[%s1518 + $0x10] sm:$0xff]
  %v1522 = vld [vmem:[%s1518 + $0x18] sm:$0xff]
  %v1523 = vrot.slane %v1440, 1
  %v1524 = vrot.slane %v1445, 1
  %v1525 = vrot.slane %v1450, 1
  %v1526 = vrot.slane %v1455, 1
  %v1527 = vrot.slane %v1460, 1
  %v1528 = vrot.slane %v1465, 1
  %v1529 = vrot.slane %v1470, 1
  %v1530 = vrot.slane %v1475, 1
  %v1531 = vrot.slane %v1480, 1
  %v1532 = vrot.slane %v1485, 1
  %v1533 = vrot.slane %v1490, 1
  %v1534 = vrot.slane %v1495, 1
  %v1535 = vrot.slane %v1500, 1
  %v1536 = vrot.slane %v1505, 1
  %v1537 = vrot.slane %v1510, 1
  %v1538 = vrot.slane %v1515, 1
  %v1539 = vsel %vm369, %v1537, %v1538
  %v1540 = vsel %vm369, %v1536, %v1537
  %v1541 = vsel %vm369, %v1535, %v1536
  %v1542 = vsel %vm369, %v1534, %v1535
  %v1543 = vsel %vm369, %v1533, %v1534
  %v1544 = vsel %vm369, %v1532, %v1533
  %v1545 = vsel %vm369, %v1531, %v1532
  %v1546 = vsel %vm369, %v1530, %v1531
  %v1547 = vsel %vm369, %v1529, %v1530
  %v1548 = vsel %vm369, %v1528, %v1529
  %v1549 = vsel %vm369, %v1527, %v1528
  %v1550 = vsel %vm369, %v1526, %v1527
  %v1551 = vsel %vm369, %v1525, %v1526
  %v1552 = vsel %vm369, %v1524, %v1525
  %v1553 = vsel %vm369, %v1523, %v1524
  %v1554 = vsel %vm369, %v1538, %v1523
  %s1555 = scalar_lea.vmem %s2, 128
  %v1556 = vld [vmem:[%s1555] sm:$0xff]
  %v1557 = vld [vmem:[%s1555 + $0x8] sm:$0xff]
  %v1558 = vld [vmem:[%s1555 + $0x10] sm:$0xff]
  %v1559 = vld [vmem:[%s1555 + $0x18] sm:$0xff]
  %v1561 = vsel %vm391, %v1553, 0
  %v1564 = vsel %vm391, %v1552, 0
  %v1567 = vsel %vm391, %v1551, 0
  %v1570 = vsel %vm391, %v1550, 0
  %v1573 = vsel %vm391, %v1549, 0
  %v1576 = vsel %vm391, %v1548, 0
  %v1579 = vsel %vm391, %v1547, 0
  %v1582 = vsel %vm391, %v1546, 0
  %v1585 = vsel %vm391, %v1545, 0
  %v1588 = vsel %vm391, %v1544, 0
  %v1591 = vsel %vm391, %v1543, 0
  %v1594 = vsel %vm391, %v1542, 0
  %v1597 = vsel %vm391, %v1541, 0
  %v1600 = vsel %vm391, %v1540, 0
  %v1603 = vsel %vm391, %v1539, 0
  %v1606 = vsel %vm391, %v1554, 0
  %1608 = vmatprep.subr.mxu0 0.0
  %1609 = vmatpush1.msra.mxu0 %v1556
  %1610 = vmatprep.subr.mxu0 0.0
  %1611 = vmatpush1.msra.mxu0 %v1557
  %1612 = vmatprep.subr.mxu0 0.0
  %1613 = vmatpush1.msra.mxu0 %v1558
  %1614 = vmatprep.subr.mxu0 0.0
  %1615 = vmatpush1.msra.mxu0 %v1559
  %1616 = vmatprep.subr.mxu0 0.0
  %1617 = vmatpush1.msra.mxu0 0.0
  %1618 = vmatprep.subr.mxu0 0.0
  %1619 = vmatpush1.msra.mxu0 0.0
  %1620 = vmatprep.subr.mxu0 0.0
  %1621 = vmatpush1.msra.mxu0 0.0
  %1622 = vmatprep.subr.mxu0 0.0
  %1623 = vmatpush1.msra.mxu0 0.0
  %1624 = vmatprep.subr.mxu0 0.0
  %1625 = vmatpush1.msra.mxu0 0.0
  %1626 = vmatprep.subr.mxu0 0.0
  %1627 = vmatpush1.msra.mxu0 0.0
  %1628 = vmatprep.subr.mxu0 0.0
  %1629 = vmatpush1.msra.mxu0 0.0
  %1630 = vmatprep.subr.mxu0 0.0
  %1631 = vmatpush1.msra.mxu0 0.0
  %1632 = vmatprep.subr.mxu0 0.0
  %1633 = vmatpush1.msra.mxu0 0.0
  %1634 = vmatprep.subr.mxu0 0.0
  %1635 = vmatpush1.msra.mxu0 0.0
  %1636 = vmatprep.subr.mxu0 0.0
  %1637 = vmatpush1.msra.mxu0 0.0
  %1638 = vmatprep.subr.mxu0 0.0
  %1639 = vmatpush1.msra.mxu0 0.0
  %1640 = vmatprep.subr.mxu0 0.0
  %1641 = vmatpush1.msra.mxu0 0.0
  %1642 = vmatprep.subr.mxu0 0.0
  %1643 = vmatpush1.msra.mxu0 0.0
  %1644 = vmatprep.subr.mxu0 0.0
  %1645 = vmatpush1.msra.mxu0 0.0
  %1646 = vmatprep.subr.mxu0 0.0
  %1647 = vmatpush1.msra.mxu0 0.0
  %1648 = vmatprep.subr.mxu0 0.0
  %1649 = vmatpush1.msra.mxu0 0.0
  %1650 = vmatprep.subr.mxu0 0.0
  %1651 = vmatpush1.msra.mxu0 0.0
  %1652 = vmatprep.subr.mxu0 0.0
  %1653 = vmatpush1.msra.mxu0 0.0
  %1654 = vmatprep.subr.mxu0 0.0
  %1655 = vmatpush1.msra.mxu0 0.0
  %1656 = vmatprep.subr.mxu0 0.0
  %1657 = vmatpush1.msra.mxu0 0.0
  %1658 = vmatprep.subr.mxu0 0.0
  %1659 = vmatpush1.msra.mxu0 0.0
  %1660 = vmatprep.subr.mxu0 0.0
  %1661 = vmatpush1.msra.mxu0 0.0
  %1662 = vmatprep.subr.mxu0 0.0
  %1663 = vmatpush1.msra.mxu0 0.0
  %1664 = vmatprep.subr.mxu0 0.0
  %1665 = vmatpush1.msra.mxu0 0.0
  %1666 = vmatprep.subr.mxu0 0.0
  %1667 = vmatpush1.msra.mxu0 0.0
  %1668 = vmatprep.subr.mxu0 0.0
  %1669 = vmatpush1.msra.mxu0 0.0
  %1670 = vmatprep.subr.mxu0 0.0
  %1671 = vmatpush1.msra.mxu0 0.0
  %1672 = vmatprep.mubr.f32.mxu0 0.0
  %1673 = vmatmul.mubr.f32.gmra.mrb[0].mxu0 %v1561
  %v1674 = vpop.f32.mrb[0].mxu0
  %v1675 = vadd.f32 0.0, %v1674
  %v1676 = vpop.f32.mrb[0].mxu0
  %1677 = vmatprep.mubr.f32.mxu0 0.0
  %1678 = vmatmul.mubr.f32.gmra.mrb[0].mxu0 %v1564
  %v1679 = vpop.f32.mrb[0].mxu0
  %v1680 = vadd.f32 0.0, %v1679
  %v1681 = vpop.f32.mrb[0].mxu0
  %1682 = vmatprep.mubr.f32.mxu0 0.0
  %1683 = vmatmul.mubr.f32.gmra.mrb[0].mxu0 %v1567
  %v1684 = vpop.f32.mrb[0].mxu0
  %v1685 = vadd.f32 0.0, %v1684
  %v1686 = vpop.f32.mrb[0].mxu0
  %1687 = vmatprep.mubr.f32.mxu0 0.0
  %1688 = vmatmul.mubr.f32.gmra.mrb[0].mxu0 %v1570
  %v1689 = vpop.f32.mrb[0].mxu0
  %v1690 = vadd.f32 0.0, %v1689
  %v1691 = vpop.f32.mrb[0].mxu0
  %1692 = vmatprep.mubr.f32.mxu0 0.0
  %1693 = vmatmul.mubr.f32.gmra.mrb[0].mxu0 %v1573
  %v1694 = vpop.f32.mrb[0].mxu0
  %v1695 = vadd.f32 0.0, %v1694
  %v1696 = vpop.f32.mrb[0].mxu0
  %1697 = vmatprep.mubr.f32.mxu0 0.0
  %1698 = vmatmul.mubr.f32.gmra.mrb[0].mxu0 %v1576
  %v1699 = vpop.f32.mrb[0].mxu0
  %v1700 = vadd.f32 0.0, %v1699
  %v1701 = vpop.f32.mrb[0].mxu0
  %1702 = vmatprep.mubr.f32.mxu0 0.0
  %1703 = vmatmul.mubr.f32.gmra.mrb[0].mxu0 %v1579
  %v1704 = vpop.f32.mrb[0].mxu0
  %v1705 = vadd.f32 0.0, %v1704
  %v1706 = vpop.f32.mrb[0].mxu0
  %1707 = vmatprep.mubr.f32.mxu0 0.0
  %1708 = vmatmul.mubr.f32.gmra.mrb[0].mxu0 %v1582
  %v1709 = vpop.f32.mrb[0].mxu0
  %v1710 = vadd.f32 0.0, %v1709
  %v1711 = vpop.f32.mrb[0].mxu0
  %1712 = vmatprep.mubr.f32.mxu0 0.0
  %1713 = vmatmul.mubr.f32.gmra.mrb[0].mxu0 %v1585
  %v1714 = vpop.f32.mrb[0].mxu0
  %v1715 = vadd.f32 0.0, %v1714
  %v1716 = vpop.f32.mrb[0].mxu0
  %1717 = vmatprep.mubr.f32.mxu0 0.0
  %1718 = vmatmul.mubr.f32.gmra.mrb[0].mxu0 %v1588
  %v1719 = vpop.f32.mrb[0].mxu0
  %v1720 = vadd.f32 0.0, %v1719
  %v1721 = vpop.f32.mrb[0].mxu0
  %1722 = vmatprep.mubr.f32.mxu0 0.0
  %1723 = vmatmul.mubr.f32.gmra.mrb[0].mxu0 %v1591
  %v1724 = vpop.f32.mrb[0].mxu0
  %v1725 = vadd.f32 0.0, %v1724
  %v1726 = vpop.f32.mrb[0].mxu0
  %1727 = vmatprep.mubr.f32.mxu0 0.0
  %1728 = vmatmul.mubr.f32.gmra.mrb[0].mxu0 %v1594
  %v1729 = vpop.f32.mrb[0].mxu0
  %v1730 = vadd.f32 0.0, %v1729
  %v1731 = vpop.f32.mrb[0].mxu0
  %1732 = vmatprep.mubr.f32.mxu0 0.0
  %1733 = vmatmul.mubr.f32.gmra.mrb[0].mxu0 %v1597
  %v1734 = vpop.f32.mrb[0].mxu0
  %v1735 = vadd.f32 0.0, %v1734
  %v1736 = vpop.f32.mrb[0].mxu0
  %1737 = vmatprep.mubr.f32.mxu0 0.0
  %1738 = vmatmul.mubr.f32.gmra.mrb[0].mxu0 %v1600
  %v1739 = vpop.f32.mrb[0].mxu0
  %v1740 = vadd.f32 0.0, %v1739
  %v1741 = vpop.f32.mrb[0].mxu0
  %1742 = vmatprep.mubr.f32.mxu0 0.0
  %1743 = vmatmul.mubr.f32.gmra.mrb[0].mxu0 %v1603
  %v1744 = vpop.f32.mrb[0].mxu0
  %v1745 = vadd.f32 0.0, %v1744
  %v1746 = vpop.f32.mrb[0].mxu0
  %1747 = vmatprep.mubr.f32.mxu0 0.0
  %1748 = vmatmul.mubr.f32.gmra.mrb[0].mxu0 %v1606
  %v1749 = vpop.f32.mrb[0].mxu0
  %v1750 = vadd.f32 0.0, %v1749
  %v1751 = vpop.f32.mrb[0].mxu0
  %1752 = vdwg.mxu0
  %v1754 = vsel %vm391, %v1440, 0
  %v1757 = vsel %vm391, %v1445, 0
  %v1760 = vsel %vm391, %v1450, 0
  %v1763 = vsel %vm391, %v1455, 0
  %v1766 = vsel %vm391, %v1460, 0
  %v1769 = vsel %vm391, %v1465, 0
  %v1772 = vsel %vm391, %v1470, 0
  %v1775 = vsel %vm391, %v1475, 0
  %v1778 = vsel %vm391, %v1480, 0
  %v1781 = vsel %vm391, %v1485, 0
  %v1784 = vsel %vm391, %v1490, 0
  %v1787 = vsel %vm391, %v1495, 0
  %v1790 = vsel %vm391, %v1500, 0
  %v1793 = vsel %vm391, %v1505, 0
  %v1796 = vsel %vm391, %v1510, 0
  %v1799 = vsel %vm391, %v1515, 0
  %1801 = vmatprep.subr.mxu0 0.0
  %1802 = vmatpush1.msra.mxu0 %v1519
  %1803 = vmatprep.subr.mxu0 0.0
  %1804 = vmatpush1.msra.mxu0 %v1520
  %1805 = vmatprep.subr.mxu0 0.0
  %1806 = vmatpush1.msra.mxu0 %v1521
  %1807 = vmatprep.subr.mxu0 0.0
  %1808 = vmatpush1.msra.mxu0 %v1522
  %1809 = vmatprep.subr.mxu0 0.0
  %1810 = vmatpush1.msra.mxu0 0.0
  %1811 = vmatprep.subr.mxu0 0.0
  %1812 = vmatpush1.msra.mxu0 0.0
  %1813 = vmatprep.subr.mxu0 0.0
  %1814 = vmatpush1.msra.mxu0 0.0
  %1815 = vmatprep.subr.mxu0 0.0
  %1816 = vmatpush1.msra.mxu0 0.0
  %1817 = vmatprep.subr.mxu0 0.0
  %1818 = vmatpush1.msra.mxu0 0.0
  %1819 = vmatprep.subr.mxu0 0.0
  %1820 = vmatpush1.msra.mxu0 0.0
  %1821 = vmatprep.subr.mxu0 0.0
  %1822 = vmatpush1.msra.mxu0 0.0
  %1823 = vmatprep.subr.mxu0 0.0
  %1824 = vmatpush1.msra.mxu0 0.0
  %1825 = vmatprep.subr.mxu0 0.0
  %1826 = vmatpush1.msra.mxu0 0.0
  %1827 = vmatprep.subr.mxu0 0.0
  %1828 = vmatpush1.msra.mxu0 0.0
  %1829 = vmatprep.subr.mxu0 0.0
  %1830 = vmatpush1.msra.mxu0 0.0
  %1831 = vmatprep.subr.mxu0 0.0
  %1832 = vmatpush1.msra.mxu0 0.0
  %1833 = vmatprep.subr.mxu0 0.0
  %1834 = vmatpush1.msra.mxu0 0.0
  %1835 = vmatprep.subr.mxu0 0.0
  %1836 = vmatpush1.msra.mxu0 0.0
  %1837 = vmatprep.subr.mxu0 0.0
  %1838 = vmatpush1.msra.mxu0 0.0
  %1839 = vmatprep.subr.mxu0 0.0
  %1840 = vmatpush1.msra.mxu0 0.0
  %1841 = vmatprep.subr.mxu0 0.0
  %1842 = vmatpush1.msra.mxu0 0.0
  %1843 = vmatprep.subr.mxu0 0.0
  %1844 = vmatpush1.msra.mxu0 0.0
  %1845 = vmatprep.subr.mxu0 0.0
  %1846 = vmatpush1.msra.mxu0 0.0
  %1847 = vmatprep.subr.mxu0 0.0
  %1848 = vmatpush1.msra.mxu0 0.0
  %1849 = vmatprep.subr.mxu0 0.0
  %1850 = vmatpush1.msra.mxu0 0.0
  %1851 = vmatprep.subr.mxu0 0.0
  %1852 = vmatpush1.msra.mxu0 0.0
  %1853 = vmatprep.subr.mxu0 0.0
  %1854 = vmatpush1.msra.mxu0 0.0
  %1855 = vmatprep.subr.mxu0 0.0
  %1856 = vmatpush1.msra.mxu0 0.0
  %1857 = vmatprep.subr.mxu0 0.0
  %1858 = vmatpush1.msra.mxu0 0.0
  %1859 = vmatprep.subr.mxu0 0.0
  %1860 = vmatpush1.msra.mxu0 0.0
  %1861 = vmatprep.subr.mxu0 0.0
  %1862 = vmatpush1.msra.mxu0 0.0
  %1863 = vmatprep.subr.mxu0 0.0
  %1864 = vmatpush1.msra.mxu0 0.0
  %1865 = vmatprep.mubr.f32.mxu0 0.0
  %1866 = vmatmul.mubr.f32.gmra.mrb[0].mxu0 %v1754
  %v1867 = vpop.f32.mrb[0].mxu0
  %v1868 = vadd.f32 %v1675, %v1867
  %v1869 = vpop.f32.mrb[0].mxu0
  %1870 = vmatprep.mubr.f32.mxu0 0.0
  %1871 = vmatmul.mubr.f32.gmra.mrb[0].mxu0 %v1757
  %v1872 = vpop.f32.mrb[0].mxu0
  %v1873 = vadd.f32 %v1680, %v1872
  %v1874 = vpop.f32.mrb[0].mxu0
  %1875 = vmatprep.mubr.f32.mxu0 0.0
  %1876 = vmatmul.mubr.f32.gmra.mrb[0].mxu0 %v1760
  %v1877 = vpop.f32.mrb[0].mxu0
  %v1878 = vadd.f32 %v1685, %v1877
  %v1879 = vpop.f32.mrb[0].mxu0
  %1880 = vmatprep.mubr.f32.mxu0 0.0
  %1881 = vmatmul.mubr.f32.gmra.mrb[0].mxu0 %v1763
  %v1882 = vpop.f32.mrb[0].mxu0
  %v1883 = vadd.f32 %v1690, %v1882
  %v1884 = vpop.f32.mrb[0].mxu0
  %1885 = vmatprep.mubr.f32.mxu0 0.0
  %1886 = vmatmul.mubr.f32.gmra.mrb[0].mxu0 %v1766
  %v1887 = vpop.f32.mrb[0].mxu0
  %v1888 = vadd.f32 %v1695, %v1887
  %v1889 = vpop.f32.mrb[0].mxu0
  %1890 = vmatprep.mubr.f32.mxu0 0.0
  %1891 = vmatmul.mubr.f32.gmra.mrb[0].mxu0 %v1769
  %v1892 = vpop.f32.mrb[0].mxu0
  %v1893 = vadd.f32 %v1700, %v1892
  %v1894 = vpop.f32.mrb[0].mxu0
  %1895 = vmatprep.mubr.f32.mxu0 0.0
  %1896 = vmatmul.mubr.f32.gmra.mrb[0].mxu0 %v1772
  %v1897 = vpop.f32.mrb[0].mxu0
  %v1898 = vadd.f32 %v1705, %v1897
  %v1899 = vpop.f32.mrb[0].mxu0
  %1900 = vmatprep.mubr.f32.mxu0 0.0
  %1901 = vmatmul.mubr.f32.gmra.mrb[0].mxu0 %v1775
  %v1902 = vpop.f32.mrb[0].mxu0
  %v1903 = vadd.f32 %v1710, %v1902
  %v1904 = vpop.f32.mrb[0].mxu0
  %1905 = vmatprep.mubr.f32.mxu0 0.0
  %1906 = vmatmul.mubr.f32.gmra.mrb[0].mxu0 %v1778
  %v1907 = vpop.f32.mrb[0].mxu0
  %v1908 = vadd.f32 %v1715, %v1907
  %v1909 = vpop.f32.mrb[0].mxu0
  %1910 = vmatprep.mubr.f32.mxu0 0.0
  %1911 = vmatmul.mubr.f32.gmra.mrb[0].mxu0 %v1781
  %v1912 = vpop.f32.mrb[0].mxu0
  %v1913 = vadd.f32 %v1720, %v1912
  %v1914 = vpop.f32.mrb[0].mxu0
  %1915 = vmatprep.mubr.f32.mxu0 0.0
  %1916 = vmatmul.mubr.f32.gmra.mrb[0].mxu0 %v1784
  %v1917 = vpop.f32.mrb[0].mxu0
  %v1918 = vadd.f32 %v1725, %v1917
  %v1919 = vpop.f32.mrb[0].mxu0
  %1920 = vmatprep.mubr.f32.mxu0 0.0
  %1921 = vmatmul.mubr.f32.gmra.mrb[0].mxu0 %v1787
  %v1922 = vpop.f32.mrb[0].mxu0
  %v1923 = vadd.f32 %v1730, %v1922
  %v1924 = vpop.f32.mrb[0].mxu0
  %1925 = vmatprep.mubr.f32.mxu0 0.0
  %1926 = vmatmul.mubr.f32.gmra.mrb[0].mxu0 %v1790
  %v1927 = vpop.f32.mrb[0].mxu0
  %v1928 = vadd.f32 %v1735, %v1927
  %v1929 = vpop.f32.mrb[0].mxu0
  %1930 = vmatprep.mubr.f32.mxu0 0.0
  %1931 = vmatmul.mubr.f32.gmra.mrb[0].mxu0 %v1793
  %v1932 = vpop.f32.mrb[0].mxu0
  %v1933 = vadd.f32 %v1740, %v1932
  %v1934 = vpop.f32.mrb[0].mxu0
  %1935 = vmatprep.mubr.f32.mxu0 0.0
  %1936 = vmatmul.mubr.f32.gmra.mrb[0].mxu0 %v1796
  %v1937 = vpop.f32.mrb[0].mxu0
  %v1938 = vadd.f32 %v1745, %v1937
  %v1939 = vpop.f32.mrb[0].mxu0
  %1940 = vmatprep.mubr.f32.mxu0 0.0
  %1941 = vmatmul.mubr.f32.gmra.mrb[0].mxu0 %v1799
  %v1942 = vpop.f32.mrb[0].mxu0
  %v1943 = vadd.f32 %v1750, %v1942
  %v1944 = vpop.f32.mrb[0].mxu0
  %1945 = vdwg.mxu0
  %v1946 = vrot.slane %v1440, 2
  %v1947 = vrot.slane %v1445, 2
  %v1948 = vrot.slane %v1450, 2
  %v1949 = vrot.slane %v1455, 2
  %v1950 = vrot.slane %v1460, 2
  %v1951 = vrot.slane %v1465, 2
  %v1952 = vrot.slane %v1470, 2
  %v1953 = vrot.slane %v1475, 2
  %v1954 = vrot.slane %v1480, 2
  %v1955 = vrot.slane %v1485, 2
  %v1956 = vrot.slane %v1490, 2
  %v1957 = vrot.slane %v1495, 2
  %v1958 = vrot.slane %v1500, 2
  %v1959 = vrot.slane %v1505, 2
  %v1960 = vrot.slane %v1510, 2
  %v1961 = vrot.slane %v1515, 2
  %v1962 = vsel %vm794, %v1960, %v1961
  %v1963 = vsel %vm794, %v1959, %v1960
  %v1964 = vsel %vm794, %v1958, %v1959
  %v1965 = vsel %vm794, %v1957, %v1958
  %v1966 = vsel %vm794, %v1956, %v1957
  %v1967 = vsel %vm794, %v1955, %v1956
  %v1968 = vsel %vm794, %v1954, %v1955
  %v1969 = vsel %vm794, %v1953, %v1954
  %v1970 = vsel %vm794, %v1952, %v1953
  %v1971 = vsel %vm794, %v1951, %v1952
  %v1972 = vsel %vm794, %v1950, %v1951
  %v1973 = vsel %vm794, %v1949, %v1950
  %v1974 = vsel %vm794, %v1948, %v1949
  %v1975 = vsel %vm794, %v1947, %v1948
  %v1976 = vsel %vm794, %v1946, %v1947
  %v1977 = vsel %vm794, %v1961, %v1946
  %s1978 = scalar_lea.vmem %s2, 160
  %v1979 = vld [vmem:[%s1978] sm:$0xff]
  %v1980 = vld [vmem:[%s1978 + $0x8] sm:$0xff]
  %v1981 = vld [vmem:[%s1978 + $0x10] sm:$0xff]
  %v1982 = vld [vmem:[%s1978 + $0x18] sm:$0xff]
  %v1984 = vsel %vm391, %v1976, 0
  %v1987 = vsel %vm391, %v1975, 0
  %v1990 = vsel %vm391, %v1974, 0
  %v1993 = vsel %vm391, %v1973, 0
  %v1996 = vsel %vm391, %v1972, 0
  %v1999 = vsel %vm391, %v1971, 0
  %v2002 = vsel %vm391, %v1970, 0
  %v2005 = vsel %vm391, %v1969, 0
  %v2008 = vsel %vm391, %v1968, 0
  %v2011 = vsel %vm391, %v1967, 0
  %v2014 = vsel %vm391, %v1966, 0
  %v2017 = vsel %vm391, %v1965, 0
  %v2020 = vsel %vm391, %v1964, 0
  %v2023 = vsel %vm391, %v1963, 0
  %v2026 = vsel %vm391, %v1962, 0
  %v2029 = vsel %vm391, %v1977, 0
  %2031 = vmatprep.subr.mxu0 0.0
  %2032 = vmatpush1.msra.mxu0 %v1979
  %2033 = vmatprep.subr.mxu0 0.0
  %2034 = vmatpush1.msra.mxu0 %v1980
  %2035 = vmatprep.subr.mxu0 0.0
  %2036 = vmatpush1.msra.mxu0 %v1981
  %2037 = vmatprep.subr.mxu0 0.0
  %2038 = vmatpush1.msra.mxu0 %v1982
  %2039 = vmatprep.subr.mxu0 0.0
  %2040 = vmatpush1.msra.mxu0 0.0
  %2041 = vmatprep.subr.mxu0 0.0
  %2042 = vmatpush1.msra.mxu0 0.0
  %2043 = vmatprep.subr.mxu0 0.0
  %2044 = vmatpush1.msra.mxu0 0.0
  %2045 = vmatprep.subr.mxu0 0.0
  %2046 = vmatpush1.msra.mxu0 0.0
  %2047 = vmatprep.subr.mxu0 0.0
  %2048 = vmatpush1.msra.mxu0 0.0
  %2049 = vmatprep.subr.mxu0 0.0
  %2050 = vmatpush1.msra.mxu0 0.0
  %2051 = vmatprep.subr.mxu0 0.0
  %2052 = vmatpush1.msra.mxu0 0.0
  %2053 = vmatprep.subr.mxu0 0.0
  %2054 = vmatpush1.msra.mxu0 0.0
  %2055 = vmatprep.subr.mxu0 0.0
  %2056 = vmatpush1.msra.mxu0 0.0
  %2057 = vmatprep.subr.mxu0 0.0
  %2058 = vmatpush1.msra.mxu0 0.0
  %2059 = vmatprep.subr.mxu0 0.0
  %2060 = vmatpush1.msra.mxu0 0.0
  %2061 = vmatprep.subr.mxu0 0.0
  %2062 = vmatpush1.msra.mxu0 0.0
  %2063 = vmatprep.subr.mxu0 0.0
  %2064 = vmatpush1.msra.mxu0 0.0
  %2065 = vmatprep.subr.mxu0 0.0
  %2066 = vmatpush1.msra.mxu0 0.0
  %2067 = vmatprep.subr.mxu0 0.0
  %2068 = vmatpush1.msra.mxu0 0.0
  %2069 = vmatprep.subr.mxu0 0.0
  %2070 = vmatpush1.msra.mxu0 0.0
  %2071 = vmatprep.subr.mxu0 0.0
  %2072 = vmatpush1.msra.mxu0 0.0
  %2073 = vmatprep.subr.mxu0 0.0
  %2074 = vmatpush1.msra.mxu0 0.0
  %2075 = vmatprep.subr.mxu0 0.0
  %2076 = vmatpush1.msra.mxu0 0.0
  %2077 = vmatprep.subr.mxu0 0.0
  %2078 = vmatpush1.msra.mxu0 0.0
  %2079 = vmatprep.subr.mxu0 0.0
  %2080 = vmatpush1.msra.mxu0 0.0
  %2081 = vmatprep.subr.mxu0 0.0
  %2082 = vmatpush1.msra.mxu0 0.0
  %2083 = vmatprep.subr.mxu0 0.0
  %2084 = vmatpush1.msra.mxu0 0.0
  %2085 = vmatprep.subr.mxu0 0.0
  %2086 = vmatpush1.msra.mxu0 0.0
  %2087 = vmatprep.subr.mxu0 0.0
  %2088 = vmatpush1.msra.mxu0 0.0
  %2089 = vmatprep.subr.mxu0 0.0
  %2090 = vmatpush1.msra.mxu0 0.0
  %2091 = vmatprep.subr.mxu0 0.0
  %2092 = vmatpush1.msra.mxu0 0.0
  %2093 = vmatprep.subr.mxu0 0.0
  %2094 = vmatpush1.msra.mxu0 0.0
  %2095 = vmatprep.mubr.f32.mxu0 0.0
  %2096 = vmatmul.mubr.f32.gmra.mrb[0].mxu0 %v1984
  %v2097 = vpop.f32.mrb[0].mxu0
  %v2098 = vadd.f32 0.0, %v2097
  %v2099 = vpop.f32.mrb[0].mxu0
  %2100 = vmatprep.mubr.f32.mxu0 0.0
  %2101 = vmatmul.mubr.f32.gmra.mrb[0].mxu0 %v1987
  %v2102 = vpop.f32.mrb[0].mxu0
  %v2103 = vadd.f32 0.0, %v2102
  %v2104 = vpop.f32.mrb[0].mxu0
  %2105 = vmatprep.mubr.f32.mxu0 0.0
  %2106 = vmatmul.mubr.f32.gmra.mrb[0].mxu0 %v1990
  %v2107 = vpop.f32.mrb[0].mxu0
  %v2108 = vadd.f32 0.0, %v2107
  %v2109 = vpop.f32.mrb[0].mxu0
  %2110 = vmatprep.mubr.f32.mxu0 0.0
  %2111 = vmatmul.mubr.f32.gmra.mrb[0].mxu0 %v1993
  %v2112 = vpop.f32.mrb[0].mxu0
  %v2113 = vadd.f32 0.0, %v2112
  %v2114 = vpop.f32.mrb[0].mxu0
  %2115 = vmatprep.mubr.f32.mxu0 0.0
  %2116 = vmatmul.mubr.f32.gmra.mrb[0].mxu0 %v1996
  %v2117 = vpop.f32.mrb[0].mxu0
  %v2118 = vadd.f32 0.0, %v2117
  %v2119 = vpop.f32.mrb[0].mxu0
  %2120 = vmatprep.mubr.f32.mxu0 0.0
  %2121 = vmatmul.mubr.f32.gmra.mrb[0].mxu0 %v1999
  %v2122 = vpop.f32.mrb[0].mxu0
  %v2123 = vadd.f32 0.0, %v2122
  %v2124 = vpop.f32.mrb[0].mxu0
  %2125 = vmatprep.mubr.f32.mxu0 0.0
  %2126 = vmatmul.mubr.f32.gmra.mrb[0].mxu0 %v2002
  %v2127 = vpop.f32.mrb[0].mxu0
  %v2128 = vadd.f32 0.0, %v2127
  %v2129 = vpop.f32.mrb[0].mxu0
  %2130 = vmatprep.mubr.f32.mxu0 0.0
  %2131 = vmatmul.mubr.f32.gmra.mrb[0].mxu0 %v2005
  %v2132 = vpop.f32.mrb[0].mxu0
  %v2133 = vadd.f32 0.0, %v2132
  %v2134 = vpop.f32.mrb[0].mxu0
  %2135 = vmatprep.mubr.f32.mxu0 0.0
  %2136 = vmatmul.mubr.f32.gmra.mrb[0].mxu0 %v2008
  %v2137 = vpop.f32.mrb[0].mxu0
  %v2138 = vadd.f32 0.0, %v2137
  %v2139 = vpop.f32.mrb[0].mxu0
  %2140 = vmatprep.mubr.f32.mxu0 0.0
  %2141 = vmatmul.mubr.f32.gmra.mrb[0].mxu0 %v2011
  %v2142 = vpop.f32.mrb[0].mxu0
  %v2143 = vadd.f32 0.0, %v2142
  %v2144 = vpop.f32.mrb[0].mxu0
  %2145 = vmatprep.mubr.f32.mxu0 0.0
  %2146 = vmatmul.mubr.f32.gmra.mrb[0].mxu0 %v2014
  %v2147 = vpop.f32.mrb[0].mxu0
  %v2148 = vadd.f32 0.0, %v2147
  %v2149 = vpop.f32.mrb[0].mxu0
  %2150 = vmatprep.mubr.f32.mxu0 0.0
  %2151 = vmatmul.mubr.f32.gmra.mrb[0].mxu0 %v2017
  %v2152 = vpop.f32.mrb[0].mxu0
  %v2153 = vadd.f32 0.0, %v2152
  %v2154 = vpop.f32.mrb[0].mxu0
  %2155 = vmatprep.mubr.f32.mxu0 0.0
  %2156 = vmatmul.mubr.f32.gmra.mrb[0].mxu0 %v2020
  %v2157 = vpop.f32.mrb[0].mxu0
  %v2158 = vadd.f32 0.0, %v2157
  %v2159 = vpop.f32.mrb[0].mxu0
  %2160 = vmatprep.mubr.f32.mxu0 0.0
  %2161 = vmatmul.mubr.f32.gmra.mrb[0].mxu0 %v2023
  %v2162 = vpop.f32.mrb[0].mxu0
  %v2163 = vadd.f32 0.0, %v2162
  %v2164 = vpop.f32.mrb[0].mxu0
  %2165 = vmatprep.mubr.f32.mxu0 0.0
  %2166 = vmatmul.mubr.f32.gmra.mrb[0].mxu0 %v2026
  %v2167 = vpop.f32.mrb[0].mxu0
  %v2168 = vadd.f32 0.0, %v2167
  %v2169 = vpop.f32.mrb[0].mxu0
  %2170 = vmatprep.mubr.f32.mxu0 0.0
  %2171 = vmatmul.mubr.f32.gmra.mrb[0].mxu0 %v2029
  %v2172 = vpop.f32.mrb[0].mxu0
  %v2173 = vadd.f32 0.0, %v2172
  %v2174 = vpop.f32.mrb[0].mxu0
  %2175 = vdwg.mxu0
  %v2176 = vadd.f32 %v1868, %v2098
  %v2177 = vadd.f32 %v1873, %v2103
  %v2178 = vadd.f32 %v1878, %v2108
  %v2179 = vadd.f32 %v1883, %v2113
  %v2180 = vadd.f32 %v1888, %v2118
  %v2181 = vadd.f32 %v1893, %v2123
  %v2182 = vadd.f32 %v1898, %v2128
  %v2183 = vadd.f32 %v1903, %v2133
  %v2184 = vadd.f32 %v1908, %v2138
  %v2185 = vadd.f32 %v1913, %v2143
  %v2186 = vadd.f32 %v1918, %v2148
  %v2187 = vadd.f32 %v1923, %v2153
  %v2188 = vadd.f32 %v1928, %v2158
  %v2189 = vadd.f32 %v1933, %v2163
  %v2190 = vadd.f32 %v1938, %v2168
  %v2191 = vadd.f32 %v1943, %v2173
  %s2192 = scalar_lea.vmem %s3, 1
  %v2193 = vld [vmem:[%s2192] sm:$0x1]
  %v2195 = vlaneseq
  %v2196 = vshrl.u32 %v2195, 7
  %v2197 = vsub.s32 0, %v2196
  %v2198 = vrot.slane %v2193, %v2197
  %v2200 = vadd.f32 %v2176, %v2198
  %v2201 = vadd.f32 %v2177, %v2198
  %v2202 = vadd.f32 %v2178, %v2198
  %v2203 = vadd.f32 %v2179, %v2198
  %v2204 = vadd.f32 %v2180, %v2198
  %v2205 = vadd.f32 %v2181, %v2198
  %v2206 = vadd.f32 %v2182, %v2198
  %v2207 = vadd.f32 %v2183, %v2198
  %v2208 = vadd.f32 %v2184, %v2198
  %v2209 = vadd.f32 %v2185, %v2198
  %v2210 = vadd.f32 %v2186, %v2198
  %v2211 = vadd.f32 %v2187, %v2198
  %v2212 = vadd.f32 %v2188, %v2198
  %v2213 = vadd.f32 %v2189, %v2198
  %v2214 = vadd.f32 %v2190, %v2198
  %v2215 = vadd.f32 %v2191, %v2198
  %v2216 = vmax.f32 %v2200, 0.0
  %v2217 = vmax.f32 %v2201, 0.0
  %v2218 = vmax.f32 %v2202, 0.0
  %v2219 = vmax.f32 %v2203, 0.0
  %v2220 = vmax.f32 %v2204, 0.0
  %v2221 = vmax.f32 %v2205, 0.0
  %v2222 = vmax.f32 %v2206, 0.0
  %v2223 = vmax.f32 %v2207, 0.0
  %v2224 = vmax.f32 %v2208, 0.0
  %v2225 = vmax.f32 %v2209, 0.0
  %v2226 = vmax.f32 %v2210, 0.0
  %v2227 = vmax.f32 %v2211, 0.0
  %v2228 = vmax.f32 %v2212, 0.0
  %v2229 = vmax.f32 %v2213, 0.0
  %v2230 = vmax.f32 %v2214, 0.0
  %v2231 = vmax.f32 %v2215, 0.0
  %v2232 = vsel %vm34, %v2216, -inf
  %v2233 = vsel %vm35, %v2217, -inf
  %v2234 = vsel %vm36, %v2218, -inf
  %v2235 = vsel %vm37, %v2219, -inf
  %v2236 = vsel %vm38, %v2220, -inf
  %v2237 = vsel %vm39, %v2221, -inf
  %v2238 = vsel %vm40, %v2222, -inf
  %v2239 = vsel %vm41, %v2223, -inf
  %v2240 = vsel %vm34, %v2224, -inf
  %v2241 = vsel %vm35, %v2225, -inf
  %v2242 = vsel %vm36, %v2226, -inf
  %v2243 = vsel %vm37, %v2227, -inf
  %v2244 = vsel %vm38, %v2228, -inf
  %v2245 = vsel %vm39, %v2229, -inf
  %v2246 = vsel %vm40, %v2230, -inf
  %v2247 = vsel %vm41, %v2231, -inf
  %v2248 = vsel %vm391, %v2232, -inf
  %v2249 = vsel %vm391, %v2233, -inf
  %v2250 = vsel %vm391, %v2234, -inf
  %v2251 = vmax.f32 %v2248, %v2250
  %v2252 = vsel %vm391, %v2235, -inf
  %v2253 = vmax.f32 %v2249, %v2252
  %v2254 = vsel %vm391, %v2236, -inf
  %v2255 = vmax.f32 %v2251, %v2254
  %v2256 = vsel %vm391, %v2237, -inf
  %v2257 = vmax.f32 %v2253, %v2256
  %v2258 = vsel %vm391, %v2238, -inf
  %v2259 = vmax.f32 %v2255, %v2258
  %v2260 = vsel %vm391, %v2239, -inf
  %v2261 = vmax.f32 %v2257, %v2260
  %v2262 = vmax.f32 %v2259, %v2261
  %v2263 = vrot.slane %v2262, 4
  %v2264 = vmax.f32 %v2262, %v2263
  %v2265 = vrot.slane %v2264, 2
  %v2266 = vmax.f32 %v2264, %v2265
  %v2267 = vrot.slane %v2266, 1
  %v2268 = vmax.f32 %v2266, %v2267
  %v2269 = vsel %vm391, %v2240, -inf
  %v2270 = vsel %vm391, %v2241, -inf
  %v2271 = vsel %vm391, %v2242, -inf
  %v2272 = vmax.f32 %v2269, %v2271
  %v2273 = vsel %vm391, %v2243, -inf
  %v2274 = vmax.f32 %v2270, %v2273
  %v2275 = vsel %vm391, %v2244, -inf
  %v2276 = vmax.f32 %v2272, %v2275
  %v2277 = vsel %vm391, %v2245, -inf
  %v2278 = vmax.f32 %v2274, %v2277
  %v2279 = vsel %vm391, %v2246, -inf
  %v2280 = vmax.f32 %v2276, %v2279
  %v2281 = vsel %vm391, %v2247, -inf
  %v2282 = vmax.f32 %v2278, %v2281
  %v2283 = vmax.f32 %v2280, %v2282
  %v2284 = vrot.slane %v2283, 4
  %v2285 = vmax.f32 %v2283, %v2284
  %v2286 = vrot.slane %v2285, 2
  %v2287 = vmax.f32 %v2285, %v2286
  %v2288 = vrot.slane %v2287, 1
  %v2289 = vmax.f32 %v2287, %v2288
  %s2290 = scalar_lea.vmem %s4, 32
  %v2291 = vld [vmem:[%s2290] sm:$0xff]
  %v2292 = vld [vmem:[%s2290 + $0x8] sm:$0xff]
  %v2293 = vld [vmem:[%s2290 + $0x10] sm:$0xff]
  %v2294 = vld [vmem:[%s2290 + $0x18] sm:$0xff]
  %s2295 = scalar_lea.vmem %s5, 1
  %v2296 = vld [vmem:[%s2295] sm:$0x1]
  %v2298 = vlaneseq
  %v2299 = vshrl.u32 %v2298, 7
  %v2300 = vsub.s32 0, %v2299
  %v2301 = vrot.slane %v2296, %v2300
  %v2305 = vsel %vm1135, %v2289, %v2268
  %v2306 = vsel %vm391, %v2305, 0
  %2308 = vmatprep.subr.mxu0 0.0
  %2309 = vmatpush1.msra.mxu0 %v2291
  %2310 = vmatprep.subr.mxu0 0.0
  %2311 = vmatpush1.msra.mxu0 %v2292
  %2312 = vmatprep.subr.mxu0 0.0
  %2313 = vmatpush1.msra.mxu0 %v2293
  %2314 = vmatprep.subr.mxu0 0.0
  %2315 = vmatpush1.msra.mxu0 %v2294
  %2316 = vmatprep.subr.mxu0 0.0
  %2317 = vmatpush1.msra.mxu0 0.0
  %2318 = vmatprep.subr.mxu0 0.0
  %2319 = vmatpush1.msra.mxu0 0.0
  %2320 = vmatprep.subr.mxu0 0.0
  %2321 = vmatpush1.msra.mxu0 0.0
  %2322 = vmatprep.subr.mxu0 0.0
  %2323 = vmatpush1.msra.mxu0 0.0
  %2324 = vmatprep.subr.mxu0 0.0
  %2325 = vmatpush1.msra.mxu0 0.0
  %2326 = vmatprep.subr.mxu0 0.0
  %2327 = vmatpush1.msra.mxu0 0.0
  %2328 = vmatprep.subr.mxu0 0.0
  %2329 = vmatpush1.msra.mxu0 0.0
  %2330 = vmatprep.subr.mxu0 0.0
  %2331 = vmatpush1.msra.mxu0 0.0
  %2332 = vmatprep.subr.mxu0 0.0
  %2333 = vmatpush1.msra.mxu0 0.0
  %2334 = vmatprep.subr.mxu0 0.0
  %2335 = vmatpush1.msra.mxu0 0.0
  %2336 = vmatprep.subr.mxu0 0.0
  %2337 = vmatpush1.msra.mxu0 0.0
  %2338 = vmatprep.subr.mxu0 0.0
  %2339 = vmatpush1.msra.mxu0 0.0
  %2340 = vmatprep.subr.mxu0 0.0
  %2341 = vmatpush1.msra.mxu0 0.0
  %2342 = vmatprep.subr.mxu0 0.0
  %2343 = vmatpush1.msra.mxu0 0.0
  %2344 = vmatprep.subr.mxu0 0.0
  %2345 = vmatpush1.msra.mxu0 0.0
  %2346 = vmatprep.subr.mxu0 0.0
  %2347 = vmatpush1.msra.mxu0 0.0
  %2348 = vmatprep.subr.mxu0 0.0
  %2349 = vmatpush1.msra.mxu0 0.0
  %2350 = vmatprep.subr.mxu0 0.0
  %2351 = vmatpush1.msra.mxu0 0.0
  %2352 = vmatprep.subr.mxu0 0.0
  %2353 = vmatpush1.msra.mxu0 0.0
  %2354 = vmatprep.subr.mxu0 0.0
  %2355 = vmatpush1.msra.mxu0 0.0
  %2356 = vmatprep.subr.mxu0 0.0
  %2357 = vmatpush1.msra.mxu0 0.0
  %2358 = vmatprep.subr.mxu0 0.0
  %2359 = vmatpush1.msra.mxu0 0.0
  %2360 = vmatprep.subr.mxu0 0.0
  %2361 = vmatpush1.msra.mxu0 0.0
  %2362 = vmatprep.subr.mxu0 0.0
  %2363 = vmatpush1.msra.mxu0 0.0
  %2364 = vmatprep.subr.mxu0 0.0
  %2365 = vmatpush1.msra.mxu0 0.0
  %2366 = vmatprep.subr.mxu0 0.0
  %2367 = vmatpush1.msra.mxu0 0.0
  %2368 = vmatprep.subr.mxu0 0.0
  %2369 = vmatpush1.msra.mxu0 0.0
  %2370 = vmatprep.subr.mxu0 0.0
  %2371 = vmatpush1.msra.mxu0 0.0
  %2372 = vmatprep.mubr.f32.mxu0 0.0
  %2373 = vmatmul.mubr.f32.gmra.mrb[0].mxu0 %v2306
  %v2374 = vpop.f32.mrb[0].mxu0
  %v2375 = vadd.f32 %v2301, %v2374
  %v2376 = vpop.f32.mrb[0].mxu0
  %2377 = vdwg.mxu0
  %s2378 = scalar_lea.vmem %s6, 2
  %2379 = vst.msk [vmem:[%s2378] sm:$0x3] %vm1209, %v2375
  // Predicated region
  $region26: #{encoder_deepconn_forward.1} parent=0 // pred_check
    _
  $region27: #{encoder_deepconn_forward.1} parent=0 // pred_check_branch
    %2381 = sbr.rel (0) target = $region29
  $region28: #{encoder_deepconn_forward.1} parent=0 // pred_region
    _
  $region29: #{encoder_deepconn_forward.1} parent=0 // pred_fallthru
    _
  // Predicated region
  $region30: #{encoder_deepconn_forward.1} parent=0 // pred_check
    _
  $region31: #{encoder_deepconn_forward.1} parent=0 // pred_check_branch
    %2383 = sbr.rel (0) target = $region33
  $region32: #{encoder_deepconn_forward.1} parent=0 // pred_region
    _
  $region33: #{encoder_deepconn_forward.1} parent=0 // pred_fallthru
    _

</llo_original>
